<compile_context>
chip_gen: v7x
topology: tpu7x:2x2x1
jax: 0.10.0
libtpu: 0.0.40
codegen_flags: <defaults>
</compile_context>

<pallas_src>
import math
from functools import partial

import jax
import jax.numpy as jnp
from jax.experimental import pallas as pl
from jax.experimental.pallas import tpu as pltpu

# ----- synthetic config (toy sizes) -----
HIDDEN = 32            # hidden size of the graph mapper
N_LAYERS = 2           # encoder layers inside graph.mapping
N_HEADS = 2
HEAD_DIM = HIDDEN // N_HEADS
INTER = 64             # FFN intermediate size
DEC_DIM = 32           # decode_layer1.shape[0] == decoder_layer_size
VOCAB = 128            # config.vocab_size (multiple of 128 -> lane-dense stores)
ENC_LN_EPS = 1e-12     # BERT-style LayerNorm eps inside the mapper
DEC_LN_EPS = 1e-5      # torch.nn.LayerNorm default eps for the decoder head


# --------------------------- in-kernel helpers --------------------------------

def _mxu(a, w):
    """bf16 x bf16 MXU matmul with f32 accumulation."""
    return jnp.dot(a.astype(jnp.bfloat16), w.astype(jnp.bfloat16),
                   preferred_element_type=jnp.float32)


def _qk(q, k):
    """q . k^T contracted on the feature dim (no explicit transpose)."""
    return jax.lax.dot_general(
        q.astype(jnp.bfloat16), k.astype(jnp.bfloat16),
        dimension_numbers=(((1,), (1,)), ((), ())),
        preferred_element_type=jnp.float32)


def _ln(x, eps, g=None, b=None):
    mu = jnp.mean(x, axis=-1, keepdims=True)
    var = jnp.mean(jnp.square(x - mu), axis=-1, keepdims=True)
    y = (x - mu) * jax.lax.rsqrt(var + eps)
    if g is not None:
        y = y * g + b
    return y


def _gelu_exact(x):
    return 0.5 * x * (1.0 + jax.lax.erf(x * (1.0 / math.sqrt(2.0))))


# --------------------------- fused kernel -------------------------------------

def _kozmo_fused_kernel(
    # inputs
    x_ref,
    wqkv_ref, bqkv_ref, wo_ref, bo_ref, ln1g_ref, ln1b_ref,
    wi_ref, bi_ref, w2_ref, b2_ref, ln2g_ref, ln2b_ref,
    decT_ref, w1_ref, wt_ref, bt_ref, lng_ref, lnb_ref, wv_ref, bv_ref,
    # outputs
    vocab_ref, matrix_ref,
    # scratch
    h_scr,
):
    """One grid step = one (batch example, encoder layer).

    The activation for the current batch example lives in h_scr (VMEM) across
    all layer steps; the decoder head runs fused at the last layer step.
    """
    l = pl.program_id(1)

    # Seed the resident activation from the input hidden states at layer 0.
    @pl.when(l == 0)
    def _():
        h_scr[...] = x_ref[...]

    h = h_scr[...]                                        # (S, H) f32

    # ---- fused QKV projection: one (H, 3H) matmul instead of three ----------
    qkv = _mxu(h, wqkv_ref[...]) + bqkv_ref[...]          # (S, 3H) f32

    # ---- self-attention: heads sliced statically in-kernel -------------------
    # No attention mask: graph.mapping receives only hidden_states (all-ones
    # mask => zero additive bias).  If a padding mask is ever needed, pass the
    # raw (B, S) mask via scalar prefetch and build the bias here in f32.
    wo = wo_ref[...]                                      # (H, H) bf16
    scale = 1.0 / math.sqrt(HEAD_DIM)
    attn_acc = jnp.zeros_like(h)                          # (S, H) f32
    for hd in range(N_HEADS):
        c0 = hd * HEAD_DIM
        q = qkv[:, c0:c0 + HEAD_DIM]
        k = qkv[:, HIDDEN + c0:HIDDEN + c0 + HEAD_DIM]
        v = qkv[:, 2 * HIDDEN + c0:2 * HIDDEN + c0 + HEAD_DIM]
        s = _qk(q, k) * scale                             # (S, S) f32 scores
        s = s - jnp.max(s, axis=-1, keepdims=True)        # softmax in f32
        p = jnp.exp(s)
        p = p * pl.reciprocal(jnp.sum(p, axis=-1, keepdims=True), approx=True)
        ctx = _mxu(p, v)                                  # (S, HEAD_DIM)
        # Head merge folded into the output projection: ctx @ W_o[head block].
        attn_acc = attn_acc + _mxu(ctx, wo[c0:c0 + HEAD_DIM, :])
    attn_out = attn_acc + bo_ref[...]

    h1 = _ln(attn_out + h, ENC_LN_EPS, ln1g_ref[...], ln1b_ref[...])

    # ---- feed-forward ---------------------------------------------------------
    inter = _gelu_exact(_mxu(h1, wi_ref[...]) + bi_ref[...])
    ffn = _mxu(inter, w2_ref[...]) + b2_ref[...]
    h2 = _ln(ffn + h1, ENC_LN_EPS, ln2g_ref[...], ln2b_ref[...])
    h_scr[...] = h2

    # ---- decoder head, fused into the last layer step ------------------------
    @pl.when(l == pl.num_programs(1) - 1)
    def _():
        mapped = h2                                       # (S, H) f32
        # kozmo_hidden1 = mapped @ decode_layer1.T   (decT_ref holds the transpose)
        kh1 = _mxu(mapped, decT_ref[...])                 # (S, DEC_DIM)
        kh1 = _ln(kh1, DEC_LN_EPS)                        # LayerNorm, no affine
        matrix1 = _mxu(kh1, w1_ref[...])                  # linear1 (no bias)
        matrix_ref[...] = matrix1
        t = _mxu(matrix1, wt_ref[...]) + bt_ref[...]      # transform
        t = jnp.maximum(t, 0.0)                           # ReLU
        t = _ln(t, DEC_LN_EPS, lng_ref[...], lnb_ref[...])
        vocab_ref[...] = _mxu(t, wv_ref[...]) + bv_ref[...]


# --------------------------- parameters ---------------------------------------

def init_params(key):
    """Deterministic synthetic weights.

    TODO(synk): self.graph (mapper_path) and decode_layer1 (sent_kozmo_path) are
    torch.load'ed in the original; here graph.mapping is approximated by a
    2-layer transformer encoder and decode_layer1 by a random (DEC_DIM, HIDDEN)
    matrix (stored pre-transposed for the kernel).
    """
    k = jax.random.split(key, 16)

    def W(kk, shape, std=0.02, dtype=jnp.bfloat16):
        return (std * jax.random.normal(kk, shape, dtype=jnp.float32)).astype(dtype)

    H, L = HIDDEN, N_LAYERS
    enc = {
        "wqkv": W(k[0], (L, H, 3 * H)),
        "bqkv": W(k[8], (L, 1, 3 * H), dtype=jnp.float32),
        "wo":   W(k[1], (L, H, H)),
        "bo":   W(k[9], (L, 1, H), dtype=jnp.float32),
        "ln1_g": jnp.ones((L, 1, H), jnp.float32),
        "ln1_b": jnp.zeros((L, 1, H), jnp.float32),
        "wi":   W(k[2], (L, H, INTER)),
        "bi":   W(k[10], (L, 1, INTER), dtype=jnp.float32),
        "w2":   W(k[3], (L, INTER, H)),
        "b2":   W(k[11], (L, 1, H), dtype=jnp.float32),
        "ln2_g": jnp.ones((L, 1, H), jnp.float32),
        "ln2_b": jnp.zeros((L, 1, H), jnp.float32),
    }
    dec = {
        "dec_T": W(k[4], (H, DEC_DIM)),                  # decode_layer1.T
        "w1":    W(k[5], (DEC_DIM, DEC_DIM)),            # linear1 (no bias)
        "wt":    W(k[6], (DEC_DIM, DEC_DIM)),            # transform
        "bt":    W(k[12], (1, DEC_DIM), dtype=jnp.float32),
        "ln_g":  jnp.ones((1, DEC_DIM), jnp.float32),
        "ln_b":  jnp.zeros((1, DEC_DIM), jnp.float32),
        "wv":    W(k[7], (DEC_DIM, VOCAB)),              # to_vocab
        "bv":    W(k[13], (1, VOCAB), dtype=jnp.float32),
    }
    return {"encoder": enc, "decoder": dec}


# --------------------------- forward pass --------------------------------------

def kozmo_decoder_forward(params, hidden_states):
    """Mirrors KozmoDecoder.forward: returns (kozmo_hidden, matrix_kozmo_hidden1)."""
    B, S, H = hidden_states.shape
    assert H == HIDDEN

    enc, dec = params["encoder"], params["decoder"]

    def lspec(shape):    # stacked per-layer tensor: pick layer l
        return pl.BlockSpec((None,) + shape, lambda b, l: (l,) + (0,) * len(shape))

    def cspec(shape):    # layer-independent tensor: single block, fetched once
        return pl.BlockSpec(shape, lambda b, l: (0,) * len(shape))

    in_specs = [
        pl.BlockSpec((None, S, H), lambda b, l: (b, 0, 0)),       # hidden_states
        lspec((H, 3 * H)), lspec((1, 3 * H)),                     # wqkv, bqkv
        lspec((H, H)), lspec((1, H)),                             # wo, bo
        lspec((1, H)), lspec((1, H)),                             # ln1 g, b
        lspec((H, INTER)), lspec((1, INTER)),                     # wi, bi
        lspec((INTER, H)), lspec((1, H)),                         # w2, b2
        lspec((1, H)), lspec((1, H)),                             # ln2 g, b
        cspec((H, DEC_DIM)),                                      # decode_layer1^T
        cspec((DEC_DIM, DEC_DIM)),                                # linear1
        cspec((DEC_DIM, DEC_DIM)), cspec((1, DEC_DIM)),           # transform w, b
        cspec((1, DEC_DIM)), cspec((1, DEC_DIM)),                 # layer_norm g, b
        cspec((DEC_DIM, VOCAB)), cspec((1, VOCAB)),               # to_vocab w, b
    ]
    out_specs = (
        pl.BlockSpec((None, S, VOCAB), lambda b, l: (b, 0, 0)),   # kozmo_hidden
        pl.BlockSpec((None, S, DEC_DIM), lambda b, l: (b, 0, 0)), # matrix_kozmo_hidden1
    )
    out_shape = (
        jax.ShapeDtypeStruct((B, S, VOCAB), jnp.float32),
        jax.ShapeDtypeStruct((B, S, DEC_DIM), jnp.float32),
    )

    kozmo_hidden, matrix1 = pl.pallas_call(
        _kozmo_fused_kernel,
        out_shape=out_shape,
        grid_spec=pltpu.PrefetchScalarGridSpec(
            num_scalar_prefetch=0,
            grid=(B, N_LAYERS),                 # batch parallel, layers sequential
            in_specs=in_specs,
            out_specs=out_specs,
            scratch_shapes=[pltpu.VMEM((S, H), jnp.float32)],   # resident activation
        ),
        compiler_params=pltpu.CompilerParams(
            dimension_semantics=("parallel", "arbitrary")),
    )(
        hidden_states,
        enc["wqkv"], enc["bqkv"], enc["wo"], enc["bo"],
        enc["ln1_g"], enc["ln1_b"],
        enc["wi"], enc["bi"], enc["w2"], enc["b2"],
        enc["ln2_g"], enc["ln2_b"],
        dec["dec_T"], dec["w1"], dec["wt"], dec["bt"],
        dec["ln_g"], dec["ln_b"], dec["wv"], dec["bv"],
    )
    return kozmo_hidden, matrix1


# --------------------------- main ----------------------------------------------

if __name__ == "__main__":
    key = jax.random.PRNGKey(0)
    pkey, xkey = jax.random.split(key)
    params = init_params(pkey)

    B, S = 2, 8
    hidden_states = jax.random.normal(xkey, (B, S, HIDDEN), dtype=jnp.float32)

    fwd = jax.jit(kozmo_decoder_forward)
    kozmo_hidden, matrix1 = fwd(params, hidden_states)
    jax.block_until_ready((kozmo_hidden, matrix1))

    assert kozmo_hidden.shape == (B, S, VOCAB)
    assert kozmo_hidden.dtype == jnp.float32
    assert matrix1.shape == (B, S, DEC_DIM)
    assert matrix1.dtype == jnp.float32
    assert bool(jnp.all(jnp.isfinite(kozmo_hidden)))
    assert bool(jnp.all(jnp.isfinite(matrix1)))
    print("KERNEL_OK")
</pallas_src>

<mosaic_0001>
module attributes {stable_mosaic.version = 11 : i64} {
  func.func @_kozmo_fused_kernel(%arg0: i32, %arg1: i32, %arg2: memref<1x8x32xf32, #tpu.memory_space<vmem>>, %arg3: memref<1x32x96xbf16, #tpu.memory_space<vmem>>, %arg4: memref<1x1x96xf32, #tpu.memory_space<vmem>>, %arg5: memref<1x32x32xbf16, #tpu.memory_space<vmem>>, %arg6: memref<1x1x32xf32, #tpu.memory_space<vmem>>, %arg7: memref<1x1x32xf32, #tpu.memory_space<vmem>>, %arg8: memref<1x1x32xf32, #tpu.memory_space<vmem>>, %arg9: memref<1x32x64xbf16, #tpu.memory_space<vmem>>, %arg10: memref<1x1x64xf32, #tpu.memory_space<vmem>>, %arg11: memref<1x64x32xbf16, #tpu.memory_space<vmem>>, %arg12: memref<1x1x32xf32, #tpu.memory_space<vmem>>, %arg13: memref<1x1x32xf32, #tpu.memory_space<vmem>>, %arg14: memref<1x1x32xf32, #tpu.memory_space<vmem>>, %arg15: memref<32x32xbf16, #tpu.memory_space<vmem>>, %arg16: memref<32x32xbf16, #tpu.memory_space<vmem>>, %arg17: memref<32x32xbf16, #tpu.memory_space<vmem>>, %arg18: memref<1x32xf32, #tpu.memory_space<vmem>>, %arg19: memref<1x32xf32, #tpu.memory_space<vmem>>, %arg20: memref<1x32xf32, #tpu.memory_space<vmem>>, %arg21: memref<32x128xbf16, #tpu.memory_space<vmem>>, %arg22: memref<1x128xf32, #tpu.memory_space<vmem>>, %arg23: memref<1x8x128xf32, #tpu.memory_space<vmem>>, %arg24: memref<1x8x32xf32, #tpu.memory_space<vmem>>, %arg25: memref<8x32xf32, #tpu.memory_space<vmem>>) attributes {dimension_semantics = [#tpu.dimension_semantics<parallel>, #tpu.dimension_semantics<arbitrary>], iteration_bounds = array<i64: 2, 2>, scalar_prefetch = 0 : i64, scratch_operands = 1 : i64, tpu.core_type = #tpu.core_type<tc>, window_params = [{transform_indices = @transform_0, window_bounds = array<i64: 1, 8, 32>}, {transform_indices = @transform_1, window_bounds = array<i64: 1, 32, 96>}, {transform_indices = @transform_2, window_bounds = array<i64: 1, 1, 96>}, {transform_indices = @transform_3, window_bounds = array<i64: 1, 32, 32>}, {transform_indices = @transform_4, window_bounds = array<i64: 1, 1, 32>}, {transform_indices = @transform_5, window_bounds = array<i64: 1, 1, 32>}, {transform_indices = @transform_6, window_bounds = array<i64: 1, 1, 32>}, {transform_indices = @transform_7, window_bounds = array<i64: 1, 32, 64>}, {transform_indices = @transform_8, window_bounds = array<i64: 1, 1, 64>}, {transform_indices = @transform_9, window_bounds = array<i64: 1, 64, 32>}, {transform_indices = @transform_10, window_bounds = array<i64: 1, 1, 32>}, {transform_indices = @transform_11, window_bounds = array<i64: 1, 1, 32>}, {transform_indices = @transform_12, window_bounds = array<i64: 1, 1, 32>}, {pipeline_mode = #tpu.pipeline_mode<synchronous>, transform_indices = @transform_13, window_bounds = array<i64: 32, 32>}, {pipeline_mode = #tpu.pipeline_mode<synchronous>, transform_indices = @transform_14, window_bounds = array<i64: 32, 32>}, {pipeline_mode = #tpu.pipeline_mode<synchronous>, transform_indices = @transform_15, window_bounds = array<i64: 32, 32>}, {pipeline_mode = #tpu.pipeline_mode<synchronous>, transform_indices = @transform_16, window_bounds = array<i64: 1, 32>}, {pipeline_mode = #tpu.pipeline_mode<synchronous>, transform_indices = @transform_17, window_bounds = array<i64: 1, 32>}, {pipeline_mode = #tpu.pipeline_mode<synchronous>, transform_indices = @transform_18, window_bounds = array<i64: 1, 32>}, {pipeline_mode = #tpu.pipeline_mode<synchronous>, transform_indices = @transform_19, window_bounds = array<i64: 32, 128>}, {pipeline_mode = #tpu.pipeline_mode<synchronous>, transform_indices = @transform_20, window_bounds = array<i64: 1, 128>}, {transform_indices = @transform_21, window_bounds = array<i64: 1, 8, 128>}, {transform_indices = @transform_22, window_bounds = array<i64: 1, 8, 32>}]} {
    %c0_i32 = arith.constant 0 : i32
    %0 = arith.cmpi eq, %arg1, %c0_i32 : i32
    %1 = arith.extui %0 : i1 to i32
    %c0_i32_0 = arith.constant 0 : i32
    %2 = arith.cmpi ne, %1, %c0_i32_0 : i32
    scf.if %2 {
      %c0_69 = arith.constant 0 : index
      %c0_70 = arith.constant 0 : index
      %c0_71 = arith.constant 0 : index
      %151 = vector.load %arg2[%c0_69, %c0_70, %c0_71] : memref<1x8x32xf32, #tpu.memory_space<vmem>>, vector<1x8x32xf32>
      %152 = vector.shape_cast %151 : vector<1x8x32xf32> to vector<8x32xf32>
      %c0_72 = arith.constant 0 : index
      %c0_73 = arith.constant 0 : index
      %153 = vector.load %arg25[%c0_72, %c0_73] : memref<8x32xf32, #tpu.memory_space<vmem>>, vector<8x32xf32>
      tpu.vector_store %arg25[%c0_72, %c0_73], %152 {strides = array<i32>} : memref<8x32xf32, #tpu.memory_space<vmem>>, vector<8x32xf32>,
    } else {
    }
    %c0 = arith.constant 0 : index
    %c0_1 = arith.constant 0 : index
    %3 = vector.load %arg25[%c0, %c0_1] : memref<8x32xf32, #tpu.memory_space<vmem>>, vector<8x32xf32>
    %c0_2 = arith.constant 0 : index
    %c0_3 = arith.constant 0 : index
    %c0_4 = arith.constant 0 : index
    %4 = vector.load %arg3[%c0_2, %c0_3, %c0_4] : memref<1x32x96xbf16, #tpu.memory_space<vmem>>, vector<1x32x96xbf16>
    %5 = vector.shape_cast %4 : vector<1x32x96xbf16> to vector<32x96xbf16>
    %6 = arith.truncf %3 : vector<8x32xf32> to vector<8x32xbf16>
    %cst = arith.constant dense<0.000000e+00> : vector<8x96xf32>
    %7 = tpu.matmul %6, %5, %cst {dimension_numbers = #tpu.dot_dimension_numbers<[1], [0], [0], [1], [0, 0, 1, 1], [], []>} : vector<8x32xbf16>, vector<32x96xbf16>, vector<8x96xf32> -> vector<8x96xf32>
    %c0_5 = arith.constant 0 : index
    %c0_6 = arith.constant 0 : index
    %c0_7 = arith.constant 0 : index
    %8 = vector.load %arg4[%c0_5, %c0_6, %c0_7] : memref<1x1x96xf32, #tpu.memory_space<vmem>>, vector<1x1x96xf32>
    %9 = vector.shape_cast %8 : vector<1x1x96xf32> to vector<1x96xf32>
    %10 = vector.broadcast %9 : vector<1x96xf32> to vector<8x96xf32>
    %11 = arith.addf %7, %10 : vector<8x96xf32>
    %c0_8 = arith.constant 0 : index
    %c0_9 = arith.constant 0 : index
    %c0_10 = arith.constant 0 : index
    %12 = vector.load %arg5[%c0_8, %c0_9, %c0_10] : memref<1x32x32xbf16, #tpu.memory_space<vmem>>, vector<1x32x32xbf16>
    %13 = vector.shape_cast %12 : vector<1x32x32xbf16> to vector<32x32xbf16>
    %cst_11 = arith.constant 0.000000e+00 : f32
    %14 = vector.broadcast %cst_11 : f32 to vector<8x32xf32>
    %15 = vector.extract_strided_slice %11 {offsets = [0, 0], sizes = [8, 16], strides = [1, 1]} : vector<8x96xf32> to vector<8x16xf32>
    %16 = vector.extract_strided_slice %11 {offsets = [0, 32], sizes = [8, 16], strides = [1, 1]} : vector<8x96xf32> to vector<8x16xf32>
    %17 = vector.extract_strided_slice %11 {offsets = [0, 64], sizes = [8, 16], strides = [1, 1]} : vector<8x96xf32> to vector<8x16xf32>
    %18 = arith.truncf %15 : vector<8x16xf32> to vector<8x16xbf16>
    %19 = arith.truncf %16 : vector<8x16xf32> to vector<8x16xbf16>
    %cst_12 = arith.constant dense<0.000000e+00> : vector<8x8xf32>
    %20 = tpu.matmul %18, %19, %cst_12 {dimension_numbers = #tpu.dot_dimension_numbers<[1], [1], [0], [0], [0, 0, 1, 0], [], []>} : vector<8x16xbf16>, vector<8x16xbf16>, vector<8x8xf32> -> vector<8x8xf32>
    %cst_13 = arith.constant 2.500000e-01 : f32
    %21 = vector.broadcast %cst_13 : f32 to vector<8x8xf32>
    %22 = arith.mulf %20, %21 : vector<8x8xf32>
    %cst_14 = arith.constant dense<0xFF800000> : vector<8xf32>
    %23 = vector.multi_reduction <maximumf>, %22, %cst_14 [1] : vector<8x8xf32> to vector<8xf32>
    %24 = vector.shape_cast %23 : vector<8xf32> to vector<8x1xf32>
    %25 = vector.broadcast %24 : vector<8x1xf32> to vector<8x8xf32>
    %26 = arith.subf %22, %25 : vector<8x8xf32>
    %27 = math.exp %26 : vector<8x8xf32>
    %cst_15 = arith.constant dense<0.000000e+00> : vector<8xf32>
    %28 = vector.multi_reduction <add>, %27, %cst_15 [1] : vector<8x8xf32> to vector<8xf32>
    %29 = vector.shape_cast %28 : vector<8xf32> to vector<8x1xf32>
    %30 = tpu.reciprocal %29 {approx = true} : vector<8x1xf32> -> vector<8x1xf32>
    %31 = vector.broadcast %30 : vector<8x1xf32> to vector<8x8xf32>
    %32 = arith.mulf %27, %31 : vector<8x8xf32>
    %33 = arith.truncf %32 : vector<8x8xf32> to vector<8x8xbf16>
    %34 = arith.truncf %17 : vector<8x16xf32> to vector<8x16xbf16>
    %cst_16 = arith.constant dense<0.000000e+00> : vector<8x16xf32>
    %35 = tpu.matmul %33, %34, %cst_16 {dimension_numbers = #tpu.dot_dimension_numbers<[1], [0], [0], [1], [0, 0, 1, 1], [], []>} : vector<8x8xbf16>, vector<8x16xbf16>, vector<8x16xf32> -> vector<8x16xf32>
    %36 = vector.extract_strided_slice %13 {offsets = [0, 0], sizes = [16, 32], strides = [1, 1]} : vector<32x32xbf16> to vector<16x32xbf16>
    %37 = arith.truncf %35 : vector<8x16xf32> to vector<8x16xbf16>
    %cst_17 = arith.constant dense<0.000000e+00> : vector<8x32xf32>
    %38 = tpu.matmul %37, %36, %cst_17 {dimension_numbers = #tpu.dot_dimension_numbers<[1], [0], [0], [1], [0, 0, 1, 1], [], []>} : vector<8x16xbf16>, vector<16x32xbf16>, vector<8x32xf32> -> vector<8x32xf32>
    %39 = arith.addf %14, %38 : vector<8x32xf32>
    %40 = vector.extract_strided_slice %11 {offsets = [0, 16], sizes = [8, 16], strides = [1, 1]} : vector<8x96xf32> to vector<8x16xf32>
    %41 = vector.extract_strided_slice %11 {offsets = [0, 48], sizes = [8, 16], strides = [1, 1]} : vector<8x96xf32> to vector<8x16xf32>
    %42 = vector.extract_strided_slice %11 {offsets = [0, 80], sizes = [8, 16], strides = [1, 1]} : vector<8x96xf32> to vector<8x16xf32>
    %43 = arith.truncf %40 : vector<8x16xf32> to vector<8x16xbf16>
    %44 = arith.truncf %41 : vector<8x16xf32> to vector<8x16xbf16>
    %cst_18 = arith.constant dense<0.000000e+00> : vector<8x8xf32>
    %45 = tpu.matmul %43, %44, %cst_18 {dimension_numbers = #tpu.dot_dimension_numbers<[1], [1], [0], [0], [0, 0, 1, 0], [], []>} : vector<8x16xbf16>, vector<8x16xbf16>, vector<8x8xf32> -> vector<8x8xf32>
    %cst_19 = arith.constant 2.500000e-01 : f32
    %46 = vector.broadcast %cst_19 : f32 to vector<8x8xf32>
    %47 = arith.mulf %45, %46 : vector<8x8xf32>
    %cst_20 = arith.constant dense<0xFF800000> : vector<8xf32>
    %48 = vector.multi_reduction <maximumf>, %47, %cst_20 [1] : vector<8x8xf32> to vector<8xf32>
    %49 = vector.shape_cast %48 : vector<8xf32> to vector<8x1xf32>
    %50 = vector.broadcast %49 : vector<8x1xf32> to vector<8x8xf32>
    %51 = arith.subf %47, %50 : vector<8x8xf32>
    %52 = math.exp %51 : vector<8x8xf32>
    %cst_21 = arith.constant dense<0.000000e+00> : vector<8xf32>
    %53 = vector.multi_reduction <add>, %52, %cst_21 [1] : vector<8x8xf32> to vector<8xf32>
    %54 = vector.shape_cast %53 : vector<8xf32> to vector<8x1xf32>
    %55 = tpu.reciprocal %54 {approx = true} : vector<8x1xf32> -> vector<8x1xf32>
    %56 = vector.broadcast %55 : vector<8x1xf32> to vector<8x8xf32>
    %57 = arith.mulf %52, %56 : vector<8x8xf32>
    %58 = arith.truncf %57 : vector<8x8xf32> to vector<8x8xbf16>
    %59 = arith.truncf %42 : vector<8x16xf32> to vector<8x16xbf16>
    %cst_22 = arith.constant dense<0.000000e+00> : vector<8x16xf32>
    %60 = tpu.matmul %58, %59, %cst_22 {dimension_numbers = #tpu.dot_dimension_numbers<[1], [0], [0], [1], [0, 0, 1, 1], [], []>} : vector<8x8xbf16>, vector<8x16xbf16>, vector<8x16xf32> -> vector<8x16xf32>
    %61 = vector.extract_strided_slice %13 {offsets = [16, 0], sizes = [16, 32], strides = [1, 1]} : vector<32x32xbf16> to vector<16x32xbf16>
    %62 = arith.truncf %60 : vector<8x16xf32> to vector<8x16xbf16>
    %cst_23 = arith.constant dense<0.000000e+00> : vector<8x32xf32>
    %63 = tpu.matmul %62, %61, %cst_23 {dimension_numbers = #tpu.dot_dimension_numbers<[1], [0], [0], [1], [0, 0, 1, 1], [], []>} : vector<8x16xbf16>, vector<16x32xbf16>, vector<8x32xf32> -> vector<8x32xf32>
    %64 = arith.addf %39, %63 : vector<8x32xf32>
    %c0_24 = arith.constant 0 : index
    %c0_25 = arith.constant 0 : index
    %c0_26 = arith.constant 0 : index
    %65 = vector.load %arg6[%c0_24, %c0_25, %c0_26] : memref<1x1x32xf32, #tpu.memory_space<vmem>>, vector<1x1x32xf32>
    %66 = vector.shape_cast %65 : vector<1x1x32xf32> to vector<1x32xf32>
    %67 = vector.broadcast %66 : vector<1x32xf32> to vector<8x32xf32>
    %68 = arith.addf %64, %67 : vector<8x32xf32>
    %69 = arith.addf %68, %3 : vector<8x32xf32>
    %c0_27 = arith.constant 0 : index
    %c0_28 = arith.constant 0 : index
    %c0_29 = arith.constant 0 : index
    %70 = vector.load %arg7[%c0_27, %c0_28, %c0_29] : memref<1x1x32xf32, #tpu.memory_space<vmem>>, vector<1x1x32xf32>
    %71 = vector.shape_cast %70 : vector<1x1x32xf32> to vector<1x32xf32>
    %c0_30 = arith.constant 0 : index
    %c0_31 = arith.constant 0 : index
    %c0_32 = arith.constant 0 : index
    %72 = vector.load %arg8[%c0_30, %c0_31, %c0_32] : memref<1x1x32xf32, #tpu.memory_space<vmem>>, vector<1x1x32xf32>
    %73 = vector.shape_cast %72 : vector<1x1x32xf32> to vector<1x32xf32>
    %cst_33 = arith.constant dense<0.000000e+00> : vector<8xf32>
    %74 = vector.multi_reduction <add>, %69, %cst_33 [1] : vector<8x32xf32> to vector<8xf32>
    %75 = vector.shape_cast %74 : vector<8xf32> to vector<8x1xf32>
    %cst_34 = arith.constant 3.200000e+01 : f32
    %76 = vector.broadcast %cst_34 : f32 to vector<8x1xf32>
    %77 = arith.divf %75, %76 : vector<8x1xf32>
    %78 = vector.broadcast %77 : vector<8x1xf32> to vector<8x32xf32>
    %79 = arith.subf %69, %78 : vector<8x32xf32>
    %80 = arith.mulf %79, %79 : vector<8x32xf32>
    %cst_35 = arith.constant dense<0.000000e+00> : vector<8xf32>
    %81 = vector.multi_reduction <add>, %80, %cst_35 [1] : vector<8x32xf32> to vector<8xf32>
    %82 = vector.shape_cast %81 : vector<8xf32> to vector<8x1xf32>
    %cst_36 = arith.constant 3.200000e+01 : f32
    %83 = vector.broadcast %cst_36 : f32 to vector<8x1xf32>
    %84 = arith.divf %82, %83 : vector<8x1xf32>
    %85 = vector.broadcast %77 : vector<8x1xf32> to vector<8x32xf32>
    %86 = arith.subf %69, %85 : vector<8x32xf32>
    %cst_37 = arith.constant 9.99999996E-13 : f32
    %87 = vector.broadcast %cst_37 : f32 to vector<8x1xf32>
    %88 = arith.addf %84, %87 : vector<8x1xf32>
    %89 = math.rsqrt %88 : vector<8x1xf32>
    %90 = vector.broadcast %89 : vector<8x1xf32> to vector<8x32xf32>
    %91 = arith.mulf %86, %90 : vector<8x32xf32>
    %92 = vector.broadcast %71 : vector<1x32xf32> to vector<8x32xf32>
    %93 = arith.mulf %91, %92 : vector<8x32xf32>
    %94 = vector.broadcast %73 : vector<1x32xf32> to vector<8x32xf32>
    %95 = arith.addf %93, %94 : vector<8x32xf32>
    %c0_38 = arith.constant 0 : index
    %c0_39 = arith.constant 0 : index
    %c0_40 = arith.constant 0 : index
    %96 = vector.load %arg9[%c0_38, %c0_39, %c0_40] : memref<1x32x64xbf16, #tpu.memory_space<vmem>>, vector<1x32x64xbf16>
    %97 = vector.shape_cast %96 : vector<1x32x64xbf16> to vector<32x64xbf16>
    %98 = arith.truncf %95 : vector<8x32xf32> to vector<8x32xbf16>
    %cst_41 = arith.constant dense<0.000000e+00> : vector<8x64xf32>
    %99 = tpu.matmul %98, %97, %cst_41 {dimension_numbers = #tpu.dot_dimension_numbers<[1], [0], [0], [1], [0, 0, 1, 1], [], []>} : vector<8x32xbf16>, vector<32x64xbf16>, vector<8x64xf32> -> vector<8x64xf32>
    %c0_42 = arith.constant 0 : index
    %c0_43 = arith.constant 0 : index
    %c0_44 = arith.constant 0 : index
    %100 = vector.load %arg10[%c0_42, %c0_43, %c0_44] : memref<1x1x64xf32, #tpu.memory_space<vmem>>, vector<1x1x64xf32>
    %101 = vector.shape_cast %100 : vector<1x1x64xf32> to vector<1x64xf32>
    %102 = vector.broadcast %101 : vector<1x64xf32> to vector<8x64xf32>
    %103 = arith.addf %99, %102 : vector<8x64xf32>
    %cst_45 = arith.constant 5.000000e-01 : f32
    %104 = vector.broadcast %cst_45 : f32 to vector<8x64xf32>
    %105 = arith.mulf %104, %103 : vector<8x64xf32>
    %cst_46 = arith.constant 0.707106769 : f32
    %106 = vector.broadcast %cst_46 : f32 to vector<8x64xf32>
    %107 = arith.mulf %103, %106 : vector<8x64xf32>
    %108 = math.erf %107 : vector<8x64xf32>
    %cst_47 = arith.constant 1.000000e+00 : f32
    %109 = vector.broadcast %cst_47 : f32 to vector<8x64xf32>
    %110 = arith.addf %109, %108 : vector<8x64xf32>
    %111 = arith.mulf %105, %110 : vector<8x64xf32>
    %c0_48 = arith.constant 0 : index
    %c0_49 = arith.constant 0 : index
    %c0_50 = arith.constant 0 : index
    %112 = vector.load %arg11[%c0_48, %c0_49, %c0_50] : memref<1x64x32xbf16, #tpu.memory_space<vmem>>, vector<1x64x32xbf16>
    %113 = vector.shape_cast %112 : vector<1x64x32xbf16> to vector<64x32xbf16>
    %114 = arith.truncf %111 : vector<8x64xf32> to vector<8x64xbf16>
    %cst_51 = arith.constant dense<0.000000e+00> : vector<8x32xf32>
    %115 = tpu.matmul %114, %113, %cst_51 {dimension_numbers = #tpu.dot_dimension_numbers<[1], [0], [0], [1], [0, 0, 1, 1], [], []>} : vector<8x64xbf16>, vector<64x32xbf16>, vector<8x32xf32> -> vector<8x32xf32>
    %c0_52 = arith.constant 0 : index
    %c0_53 = arith.constant 0 : index
    %c0_54 = arith.constant 0 : index
    %116 = vector.load %arg12[%c0_52, %c0_53, %c0_54] : memref<1x1x32xf32, #tpu.memory_space<vmem>>, vector<1x1x32xf32>
    %117 = vector.shape_cast %116 : vector<1x1x32xf32> to vector<1x32xf32>
    %118 = vector.broadcast %117 : vector<1x32xf32> to vector<8x32xf32>
    %119 = arith.addf %115, %118 : vector<8x32xf32>
    %120 = arith.addf %119, %95 : vector<8x32xf32>
    %c0_55 = arith.constant 0 : index
    %c0_56 = arith.constant 0 : index
    %c0_57 = arith.constant 0 : index
    %121 = vector.load %arg13[%c0_55, %c0_56, %c0_57] : memref<1x1x32xf32, #tpu.memory_space<vmem>>, vector<1x1x32xf32>
    %122 = vector.shape_cast %121 : vector<1x1x32xf32> to vector<1x32xf32>
    %c0_58 = arith.constant 0 : index
    %c0_59 = arith.constant 0 : index
    %c0_60 = arith.constant 0 : index
    %123 = vector.load %arg14[%c0_58, %c0_59, %c0_60] : memref<1x1x32xf32, #tpu.memory_space<vmem>>, vector<1x1x32xf32>
    %124 = vector.shape_cast %123 : vector<1x1x32xf32> to vector<1x32xf32>
    %cst_61 = arith.constant dense<0.000000e+00> : vector<8xf32>
    %125 = vector.multi_reduction <add>, %120, %cst_61 [1] : vector<8x32xf32> to vector<8xf32>
    %126 = vector.shape_cast %125 : vector<8xf32> to vector<8x1xf32>
    %cst_62 = arith.constant 3.200000e+01 : f32
    %127 = vector.broadcast %cst_62 : f32 to vector<8x1xf32>
    %128 = arith.divf %126, %127 : vector<8x1xf32>
    %129 = vector.broadcast %128 : vector<8x1xf32> to vector<8x32xf32>
    %130 = arith.subf %120, %129 : vector<8x32xf32>
    %131 = arith.mulf %130, %130 : vector<8x32xf32>
    %cst_63 = arith.constant dense<0.000000e+00> : vector<8xf32>
    %132 = vector.multi_reduction <add>, %131, %cst_63 [1] : vector<8x32xf32> to vector<8xf32>
    %133 = vector.shape_cast %132 : vector<8xf32> to vector<8x1xf32>
    %cst_64 = arith.constant 3.200000e+01 : f32
    %134 = vector.broadcast %cst_64 : f32 to vector<8x1xf32>
    %135 = arith.divf %133, %134 : vector<8x1xf32>
    %136 = vector.broadcast %128 : vector<8x1xf32> to vector<8x32xf32>
    %137 = arith.subf %120, %136 : vector<8x32xf32>
    %cst_65 = arith.constant 9.99999996E-13 : f32
    %138 = vector.broadcast %cst_65 : f32 to vector<8x1xf32>
    %139 = arith.addf %135, %138 : vector<8x1xf32>
    %140 = math.rsqrt %139 : vector<8x1xf32>
    %141 = vector.broadcast %140 : vector<8x1xf32> to vector<8x32xf32>
    %142 = arith.mulf %137, %141 : vector<8x32xf32>
    %143 = vector.broadcast %122 : vector<1x32xf32> to vector<8x32xf32>
    %144 = arith.mulf %142, %143 : vector<8x32xf32>
    %145 = vector.broadcast %124 : vector<1x32xf32> to vector<8x32xf32>
    %146 = arith.addf %144, %145 : vector<8x32xf32>
    %c0_66 = arith.constant 0 : index
    %c0_67 = arith.constant 0 : index
    %147 = vector.load %arg25[%c0_66, %c0_67] : memref<8x32xf32, #tpu.memory_space<vmem>>, vector<8x32xf32>
    tpu.vector_store %arg25[%c0_66, %c0_67], %146 {strides = array<i32>} : memref<8x32xf32, #tpu.memory_space<vmem>>, vector<8x32xf32>,
    %c1_i32 = arith.constant 1 : i32
    %148 = arith.cmpi eq, %arg1, %c1_i32 : i32
    %149 = arith.extui %148 : i1 to i32
    %c0_i32_68 = arith.constant 0 : i32
    %150 = arith.cmpi ne, %149, %c0_i32_68 : i32
    scf.if %150 {
      %c0_69 = arith.constant 0 : index
      %c0_70 = arith.constant 0 : index
      %151 = vector.load %arg15[%c0_69, %c0_70] : memref<32x32xbf16, #tpu.memory_space<vmem>>, vector<32x32xbf16>
      %152 = arith.truncf %146 : vector<8x32xf32> to vector<8x32xbf16>
      %cst_71 = arith.constant dense<0.000000e+00> : vector<8x32xf32>
      %153 = tpu.matmul %152, %151, %cst_71 {dimension_numbers = #tpu.dot_dimension_numbers<[1], [0], [0], [1], [0, 0, 1, 1], [], []>} : vector<8x32xbf16>, vector<32x32xbf16>, vector<8x32xf32> -> vector<8x32xf32>
      %cst_72 = arith.constant dense<0.000000e+00> : vector<8xf32>
      %154 = vector.multi_reduction <add>, %153, %cst_72 [1] : vector<8x32xf32> to vector<8xf32>
      %155 = vector.shape_cast %154 : vector<8xf32> to vector<8x1xf32>
      %cst_73 = arith.constant 3.200000e+01 : f32
      %156 = vector.broadcast %cst_73 : f32 to vector<8x1xf32>
      %157 = arith.divf %155, %156 : vector<8x1xf32>
      %158 = vector.broadcast %157 : vector<8x1xf32> to vector<8x32xf32>
      %159 = arith.subf %153, %158 : vector<8x32xf32>
      %160 = arith.mulf %159, %159 : vector<8x32xf32>
      %cst_74 = arith.constant dense<0.000000e+00> : vector<8xf32>
      %161 = vector.multi_reduction <add>, %160, %cst_74 [1] : vector<8x32xf32> to vector<8xf32>
      %162 = vector.shape_cast %161 : vector<8xf32> to vector<8x1xf32>
      %cst_75 = arith.constant 3.200000e+01 : f32
      %163 = vector.broadcast %cst_75 : f32 to vector<8x1xf32>
      %164 = arith.divf %162, %163 : vector<8x1xf32>
      %165 = vector.broadcast %157 : vector<8x1xf32> to vector<8x32xf32>
      %166 = arith.subf %153, %165 : vector<8x32xf32>
      %cst_76 = arith.constant 9.99999974E-6 : f32
      %167 = vector.broadcast %cst_76 : f32 to vector<8x1xf32>
      %168 = arith.addf %164, %167 : vector<8x1xf32>
      %169 = math.rsqrt %168 : vector<8x1xf32>
      %170 = vector.broadcast %169 : vector<8x1xf32> to vector<8x32xf32>
      %171 = arith.mulf %166, %170 : vector<8x32xf32>
      %c0_77 = arith.constant 0 : index
      %c0_78 = arith.constant 0 : index
      %172 = vector.load %arg16[%c0_77, %c0_78] : memref<32x32xbf16, #tpu.memory_space<vmem>>, vector<32x32xbf16>
      %173 = arith.truncf %171 : vector<8x32xf32> to vector<8x32xbf16>
      %cst_79 = arith.constant dense<0.000000e+00> : vector<8x32xf32>
      %174 = tpu.matmul %173, %172, %cst_79 {dimension_numbers = #tpu.dot_dimension_numbers<[1], [0], [0], [1], [0, 0, 1, 1], [], []>} : vector<8x32xbf16>, vector<32x32xbf16>, vector<8x32xf32> -> vector<8x32xf32>
      %c0_80 = arith.constant 0 : index
      %c0_81 = arith.constant 0 : index
      %c0_82 = arith.constant 0 : index
      %175 = vector.load %arg24[%c0_80, %c0_81, %c0_82] : memref<1x8x32xf32, #tpu.memory_space<vmem>>, vector<1x8x32xf32>
      %176 = vector.shape_cast %175 : vector<1x8x32xf32> to vector<8x32xf32>
      %177 = vector.shape_cast %174 : vector<8x32xf32> to vector<1x8x32xf32>
      tpu.vector_store %arg24[%c0_80, %c0_81, %c0_82], %177 {strides = array<i32>} : memref<1x8x32xf32, #tpu.memory_space<vmem>>, vector<1x8x32xf32>,
      %c0_83 = arith.constant 0 : index
      %c0_84 = arith.constant 0 : index
      %178 = vector.load %arg17[%c0_83, %c0_84] : memref<32x32xbf16, #tpu.memory_space<vmem>>, vector<32x32xbf16>
      %179 = arith.truncf %174 : vector<8x32xf32> to vector<8x32xbf16>
      %cst_85 = arith.constant dense<0.000000e+00> : vector<8x32xf32>
      %180 = tpu.matmul %179, %178, %cst_85 {dimension_numbers = #tpu.dot_dimension_numbers<[1], [0], [0], [1], [0, 0, 1, 1], [], []>} : vector<8x32xbf16>, vector<32x32xbf16>, vector<8x32xf32> -> vector<8x32xf32>
      %c0_86 = arith.constant 0 : index
      %c0_87 = arith.constant 0 : index
      %181 = vector.load %arg18[%c0_86, %c0_87] : memref<1x32xf32, #tpu.memory_space<vmem>>, vector<1x32xf32>
      %182 = vector.broadcast %181 : vector<1x32xf32> to vector<8x32xf32>
      %183 = arith.addf %180, %182 : vector<8x32xf32>
      %cst_88 = arith.constant 0.000000e+00 : f32
      %184 = vector.broadcast %cst_88 : f32 to vector<8x32xf32>
      %185 = arith.maximumf %183, %184 : vector<8x32xf32>
      %c0_89 = arith.constant 0 : index
      %c0_90 = arith.constant 0 : index
      %186 = vector.load %arg19[%c0_89, %c0_90] : memref<1x32xf32, #tpu.memory_space<vmem>>, vector<1x32xf32>
      %c0_91 = arith.constant 0 : index
      %c0_92 = arith.constant 0 : index
      %187 = vector.load %arg20[%c0_91, %c0_92] : memref<1x32xf32, #tpu.memory_space<vmem>>, vector<1x32xf32>
      %cst_93 = arith.constant dense<0.000000e+00> : vector<8xf32>
      %188 = vector.multi_reduction <add>, %185, %cst_93 [1] : vector<8x32xf32> to vector<8xf32>
      %189 = vector.shape_cast %188 : vector<8xf32> to vector<8x1xf32>
      %cst_94 = arith.constant 3.200000e+01 : f32
      %190 = vector.broadcast %cst_94 : f32 to vector<8x1xf32>
      %191 = arith.divf %189, %190 : vector<8x1xf32>
      %192 = vector.broadcast %191 : vector<8x1xf32> to vector<8x32xf32>
      %193 = arith.subf %185, %192 : vector<8x32xf32>
      %194 = arith.mulf %193, %193 : vector<8x32xf32>
      %cst_95 = arith.constant dense<0.000000e+00> : vector<8xf32>
      %195 = vector.multi_reduction <add>, %194, %cst_95 [1] : vector<8x32xf32> to vector<8xf32>
      %196 = vector.shape_cast %195 : vector<8xf32> to vector<8x1xf32>
      %cst_96 = arith.constant 3.200000e+01 : f32
      %197 = vector.broadcast %cst_96 : f32 to vector<8x1xf32>
      %198 = arith.divf %196, %197 : vector<8x1xf32>
      %199 = vector.broadcast %191 : vector<8x1xf32> to vector<8x32xf32>
      %200 = arith.subf %185, %199 : vector<8x32xf32>
      %cst_97 = arith.constant 9.99999974E-6 : f32
      %201 = vector.broadcast %cst_97 : f32 to vector<8x1xf32>
      %202 = arith.addf %198, %201 : vector<8x1xf32>
      %203 = math.rsqrt %202 : vector<8x1xf32>
      %204 = vector.broadcast %203 : vector<8x1xf32> to vector<8x32xf32>
      %205 = arith.mulf %200, %204 : vector<8x32xf32>
      %206 = vector.broadcast %186 : vector<1x32xf32> to vector<8x32xf32>
      %207 = arith.mulf %205, %206 : vector<8x32xf32>
      %208 = vector.broadcast %187 : vector<1x32xf32> to vector<8x32xf32>
      %209 = arith.addf %207, %208 : vector<8x32xf32>
      %c0_98 = arith.constant 0 : index
      %c0_99 = arith.constant 0 : index
      %210 = vector.load %arg21[%c0_98, %c0_99] : memref<32x128xbf16, #tpu.memory_space<vmem>>, vector<32x128xbf16>
      %211 = arith.truncf %209 : vector<8x32xf32> to vector<8x32xbf16>
      %cst_100 = arith.constant dense<0.000000e+00> : vector<8x128xf32>
      %212 = tpu.matmul %211, %210, %cst_100 {dimension_numbers = #tpu.dot_dimension_numbers<[1], [0], [0], [1], [0, 0, 1, 1], [], []>} : vector<8x32xbf16>, vector<32x128xbf16>, vector<8x128xf32> -> vector<8x128xf32>
      %c0_101 = arith.constant 0 : index
      %c0_102 = arith.constant 0 : index
      %213 = vector.load %arg22[%c0_101, %c0_102] : memref<1x128xf32, #tpu.memory_space<vmem>>, vector<1x128xf32>
      %214 = vector.broadcast %213 : vector<1x128xf32> to vector<8x128xf32>
      %215 = arith.addf %212, %214 : vector<8x128xf32>
      %c0_103 = arith.constant 0 : index
      %c0_104 = arith.constant 0 : index
      %c0_105 = arith.constant 0 : index
      %216 = vector.load %arg23[%c0_103, %c0_104, %c0_105] : memref<1x8x128xf32, #tpu.memory_space<vmem>>, vector<1x8x128xf32>
      %217 = vector.shape_cast %216 : vector<1x8x128xf32> to vector<8x128xf32>
      %218 = vector.shape_cast %215 : vector<8x128xf32> to vector<1x8x128xf32>
      tpu.vector_store %arg23[%c0_103, %c0_104, %c0_105], %218 {strides = array<i32>} : memref<1x8x128xf32, #tpu.memory_space<vmem>>, vector<1x8x128xf32>,
    } else {
    }
    return
  }
  func.func @transform_0(%arg0: i32, %arg1: i32) -> (i32, i32, i32) {
    %c0_i32 = arith.constant 0 : i32
    %c0_i32_0 = arith.constant 0 : i32
    %c0_i32_1 = arith.constant 0 : i32
    return %arg0, %c0_i32, %c0_i32_0 : i32, i32, i32
  }
  func.func @transform_1(%arg0: i32, %arg1: i32) -> (i32, i32, i32) {
    %c0_i32 = arith.constant 0 : i32
    %c0_i32_0 = arith.constant 0 : i32
    %c0_i32_1 = arith.constant 0 : i32
    return %arg1, %c0_i32, %c0_i32_0 : i32, i32, i32
  }
  func.func @transform_2(%arg0: i32, %arg1: i32) -> (i32, i32, i32) {
    %c0_i32 = arith.constant 0 : i32
    %c0_i32_0 = arith.constant 0 : i32
    %c0_i32_1 = arith.constant 0 : i32
    return %arg1, %c0_i32, %c0_i32_0 : i32, i32, i32
  }
  func.func @transform_3(%arg0: i32, %arg1: i32) -> (i32, i32, i32) {
    %c0_i32 = arith.constant 0 : i32
    %c0_i32_0 = arith.constant 0 : i32
    %c0_i32_1 = arith.constant 0 : i32
    return %arg1, %c0_i32, %c0_i32_0 : i32, i32, i32
  }
  func.func @transform_4(%arg0: i32, %arg1: i32) -> (i32, i32, i32) {
    %c0_i32 = arith.constant 0 : i32
    %c0_i32_0 = arith.constant 0 : i32
    %c0_i32_1 = arith.constant 0 : i32
    return %arg1, %c0_i32, %c0_i32_0 : i32, i32, i32
  }
  func.func @transform_5(%arg0: i32, %arg1: i32) -> (i32, i32, i32) {
    %c0_i32 = arith.constant 0 : i32
    %c0_i32_0 = arith.constant 0 : i32
    %c0_i32_1 = arith.constant 0 : i32
    return %arg1, %c0_i32, %c0_i32_0 : i32, i32, i32
  }
  func.func @transform_6(%arg0: i32, %arg1: i32) -> (i32, i32, i32) {
    %c0_i32 = arith.constant 0 : i32
    %c0_i32_0 = arith.constant 0 : i32
    %c0_i32_1 = arith.constant 0 : i32
    return %arg1, %c0_i32, %c0_i32_0 : i32, i32, i32
  }
  func.func @transform_7(%arg0: i32, %arg1: i32) -> (i32, i32, i32) {
    %c0_i32 = arith.constant 0 : i32
    %c0_i32_0 = arith.constant 0 : i32
    %c0_i32_1 = arith.constant 0 : i32
    return %arg1, %c0_i32, %c0_i32_0 : i32, i32, i32
  }
  func.func @transform_8(%arg0: i32, %arg1: i32) -> (i32, i32, i32) {
    %c0_i32 = arith.constant 0 : i32
    %c0_i32_0 = arith.constant 0 : i32
    %c0_i32_1 = arith.constant 0 : i32
    return %arg1, %c0_i32, %c0_i32_0 : i32, i32, i32
  }
  func.func @transform_9(%arg0: i32, %arg1: i32) -> (i32, i32, i32) {
    %c0_i32 = arith.constant 0 : i32
    %c0_i32_0 = arith.constant 0 : i32
    %c0_i32_1 = arith.constant 0 : i32
    return %arg1, %c0_i32, %c0_i32_0 : i32, i32, i32
  }
  func.func @transform_10(%arg0: i32, %arg1: i32) -> (i32, i32, i32) {
    %c0_i32 = arith.constant 0 : i32
    %c0_i32_0 = arith.constant 0 : i32
    %c0_i32_1 = arith.constant 0 : i32
    return %arg1, %c0_i32, %c0_i32_0 : i32, i32, i32
  }
  func.func @transform_11(%arg0: i32, %arg1: i32) -> (i32, i32, i32) {
    %c0_i32 = arith.constant 0 : i32
    %c0_i32_0 = arith.constant 0 : i32
    %c0_i32_1 = arith.constant 0 : i32
    return %arg1, %c0_i32, %c0_i32_0 : i32, i32, i32
  }
  func.func @transform_12(%arg0: i32, %arg1: i32) -> (i32, i32, i32) {
    %c0_i32 = arith.constant 0 : i32
    %c0_i32_0 = arith.constant 0 : i32
    %c0_i32_1 = arith.constant 0 : i32
    return %arg1, %c0_i32, %c0_i32_0 : i32, i32, i32
  }
  func.func @transform_13(%arg0: i32, %arg1: i32) -> (i32, i32) {
    %c0_i32 = arith.constant 0 : i32
    %c0_i32_0 = arith.constant 0 : i32
    %c0_i32_1 = arith.constant 0 : i32
    return %c0_i32, %c0_i32_0 : i32, i32
  }
  func.func @transform_14(%arg0: i32, %arg1: i32) -> (i32, i32) {
    %c0_i32 = arith.constant 0 : i32
    %c0_i32_0 = arith.constant 0 : i32
    %c0_i32_1 = arith.constant 0 : i32
    return %c0_i32, %c0_i32_0 : i32, i32
  }
  func.func @transform_15(%arg0: i32, %arg1: i32) -> (i32, i32) {
    %c0_i32 = arith.constant 0 : i32
    %c0_i32_0 = arith.constant 0 : i32
    %c0_i32_1 = arith.constant 0 : i32
    return %c0_i32, %c0_i32_0 : i32, i32
  }
  func.func @transform_16(%arg0: i32, %arg1: i32) -> (i32, i32) {
    %c0_i32 = arith.constant 0 : i32
    %c0_i32_0 = arith.constant 0 : i32
    %c0_i32_1 = arith.constant 0 : i32
    return %c0_i32, %c0_i32_0 : i32, i32
  }
  func.func @transform_17(%arg0: i32, %arg1: i32) -> (i32, i32) {
    %c0_i32 = arith.constant 0 : i32
    %c0_i32_0 = arith.constant 0 : i32
    %c0_i32_1 = arith.constant 0 : i32
    return %c0_i32, %c0_i32_0 : i32, i32
  }
  func.func @transform_18(%arg0: i32, %arg1: i32) -> (i32, i32) {
    %c0_i32 = arith.constant 0 : i32
    %c0_i32_0 = arith.constant 0 : i32
    %c0_i32_1 = arith.constant 0 : i32
    return %c0_i32, %c0_i32_0 : i32, i32
  }
  func.func @transform_19(%arg0: i32, %arg1: i32) -> (i32, i32) {
    %c0_i32 = arith.constant 0 : i32
    %c0_i32_0 = arith.constant 0 : i32
    %c0_i32_1 = arith.constant 0 : i32
    return %c0_i32, %c0_i32_0 : i32, i32
  }
  func.func @transform_20(%arg0: i32, %arg1: i32) -> (i32, i32) {
    %c0_i32 = arith.constant 0 : i32
    %c0_i32_0 = arith.constant 0 : i32
    %c0_i32_1 = arith.constant 0 : i32
    return %c0_i32, %c0_i32_0 : i32, i32
  }
  func.func @transform_21(%arg0: i32, %arg1: i32) -> (i32, i32, i32) {
    %c0_i32 = arith.constant 0 : i32
    %c0_i32_0 = arith.constant 0 : i32
    %c0_i32_1 = arith.constant 0 : i32
    return %arg0, %c0_i32, %c0_i32_0 : i32, i32, i32
  }
  func.func @transform_22(%arg0: i32, %arg1: i32) -> (i32, i32, i32) {
    %c0_i32 = arith.constant 0 : i32
    %c0_i32_0 = arith.constant 0 : i32
    %c0_i32_1 = arith.constant 0 : i32
    return %arg0, %c0_i32, %c0_i32_0 : i32, i32, i32
  }
}

</mosaic_0001>

<llo_original>
// kernel: kozmo_decoder_forward.1
$region0: #{kozmo_decoder_forward.1}
  #allocation0 [shape = 'u32[]', space=smem, size = 0x4, offset = 0x4, fixed_abs, tag = 'smem constant byte address 0x4 - core index']
  #allocation1 [shape = 'u32[144,128]{1,0:T(1,128)}', space=vmem, size = 0x12000, scoped, tag = 'internal scratch']
  #allocation2 [shape = 'f32[8,32]{1,0:T(8,128)}', space=vmem, size = 0x1000, scoped, tag = 'scratch operand']
  %s0 = inlined_call_operand.vmem [shape: f32[2,8,32], index: 0, kind: input, shape index: {}]
  %s1 = inlined_call_operand.vmem [shape: bf16[2,32,96], index: 1, kind: input, shape index: {}]
  %s2 = inlined_call_operand.vmem [shape: f32[2,1,96], index: 2, kind: input, shape index: {}]
  %s3 = inlined_call_operand.vmem [shape: bf16[2,32,32], index: 3, kind: input, shape index: {}]
  %s4 = inlined_call_operand.vmem [shape: f32[2,1,32], index: 4, kind: input, shape index: {}]
  %s5 = inlined_call_operand.vmem [shape: f32[2,1,32], index: 5, kind: input, shape index: {}]
  %s6 = inlined_call_operand.vmem [shape: f32[2,1,32], index: 6, kind: input, shape index: {}]
  %s7 = inlined_call_operand.vmem [shape: bf16[2,32,64], index: 7, kind: input, shape index: {}]
  %s8 = inlined_call_operand.vmem [shape: f32[2,1,64], index: 8, kind: input, shape index: {}]
  %s9 = inlined_call_operand.vmem [shape: bf16[2,64,32], index: 9, kind: input, shape index: {}]
  %s10 = inlined_call_operand.vmem [shape: f32[2,1,32], index: 10, kind: input, shape index: {}]
  %s11 = inlined_call_operand.hbm [shape: f32[2,1,32], index: 11, kind: input, shape index: {}]
  %s12 = inlined_call_operand.hbm [shape: f32[2,1,32], index: 12, kind: input, shape index: {}]
  %s13 = inlined_call_operand.hbm [shape: bf16[32,32], index: 13, kind: input, shape index: {}]
  %s14 = inlined_call_operand.hbm [shape: bf16[32,32], index: 14, kind: input, shape index: {}]
  %s15 = inlined_call_operand.hbm [shape: bf16[32,32], index: 15, kind: input, shape index: {}]
  %s16 = inlined_call_operand.hbm [shape: f32[1,32], index: 16, kind: input, shape index: {}]
  %s17 = inlined_call_operand.hbm [shape: f32[1,32], index: 17, kind: input, shape index: {}]
  %s18 = inlined_call_operand.hbm [shape: f32[1,32], index: 18, kind: input, shape index: {}]
  %s19 = inlined_call_operand.hbm [shape: bf16[32,128], index: 19, kind: input, shape index: {}]
  %s20 = inlined_call_operand.hbm [shape: f32[1,128], index: 20, kind: input, shape index: {}]
  %s21 = inlined_call_operand.hbm [shape: f32[2,8,128], index: 21, kind: output, shape index: {0}]
  %s22 = inlined_call_operand.hbm [shape: f32[2,8,32], index: 22, kind: output, shape index: {1}]
  %23 = xla_tuple %s21, %s22
  %s24 = sld [smem:[#allocation0]]
  $region173: #{kozmo_decoder_forward.1} parent=0
    _
  %s26 = ssub.s32 1, %s24
  %s27 = scalar_select 0, %s26, %s24
  $region1: #{kozmo_decoder_forward.1} parent=0
    #allocation3 [shape = 'u8[1024]{0}', space=vmem, size = 0x400, scoped, tag = 'input window, operand 11']
    #allocation4 [shape = 's32[2]{0}', space=sflag, size = 0x8, scoped, tag = 'scoped memory for kozmo_decoder_forward.1']
    #allocation5 [shape = 's32[2]{0}', space=sflag, size = 0x8, scoped, tag = 'scoped memory for kozmo_decoder_forward.1']
    #allocation6 [shape = 'u8[1024]{0}', space=vmem, size = 0x400, scoped, tag = 'input window, operand 12']
    #allocation7 [shape = 's32[2]{0}', space=sflag, size = 0x8, scoped, tag = 'scoped memory for kozmo_decoder_forward.1']
    #allocation8 [shape = 'u8[8192]{0}', space=vmem, size = 0x2000, scoped, tag = 'input window, operand 13, single buffered']
    #allocation9 [shape = 'u8[8192]{0}', space=vmem, size = 0x2000, scoped, tag = 'input window, operand 14, single buffered']
    #allocation10 [shape = 's32[1]{0}', space=sflag, size = 0x4, scoped, tag = 'scoped memory for kozmo_decoder_forward.1']
    #allocation11 [shape = 'u8[8192]{0}', space=vmem, size = 0x2000, scoped, tag = 'input window, operand 15, single buffered']
    #allocation12 [shape = 'u8[512]{0}', space=vmem, size = 0x400, scoped, tag = 'input window, operand 16, single buffered']
    #allocation13 [shape = 's32[1]{0}', space=sflag, size = 0x4, scoped, tag = 'scoped memory for kozmo_decoder_forward.1']
    #allocation14 [shape = 'u8[512]{0}', space=vmem, size = 0x400, scoped, tag = 'input window, operand 17, single buffered']
    #allocation15 [shape = 'u8[512]{0}', space=vmem, size = 0x400, scoped, tag = 'input window, operand 18, single buffered']
    #allocation16 [shape = 's32[1]{0}', space=sflag, size = 0x4, scoped, tag = 'scoped memory for kozmo_decoder_forward.1']
    #allocation17 [shape = 'u8[8192]{0}', space=vmem, size = 0x2000, scoped, tag = 'input window, operand 19, single buffered']
    #allocation18 [shape = 'u8[512]{0}', space=vmem, size = 0x400, scoped, tag = 'input window, operand 20, single buffered']
    #allocation19 [shape = 's32[1]{0}', space=sflag, size = 0x4, scoped, tag = 'scoped memory for kozmo_decoder_forward.1']
    #allocation20 [shape = 'u8[8192]{0}', space=vmem, size = 0x2000, scoped, tag = 'output window, operand 0']
    #allocation21 [shape = 'u8[8192]{0}', space=vmem, size = 0x2000, scoped, tag = 'output window, operand 1']
    #allocation22 [shape = 's32[2]{0}', space=sflag, size = 0x8, scoped, tag = 'scoped memory for kozmo_decoder_forward.1']
    %28 = vsyncpa [#allocation4], 0
    %s29 = scalar_lea.sflag [#allocation4], 1
    %30 = vsyncpa %s29, 0
    %31 = vsyncpa [#allocation7], 0
    %s32 = scalar_lea.sflag [#allocation7], 1
    %33 = vsyncpa %s32, 0
    %34 = vsyncpa [#allocation10], 0
    %35 = vsyncpa [#allocation13], 0
    %36 = vsyncpa [#allocation16], 0
    %37 = vsyncpa [#allocation19], 0
    %38 = vsyncpa [#allocation5], 0
    %s39 = scalar_lea.sflag [#allocation5], 1
    %40 = vsyncpa %s39, 0
    %41 = vsyncpa [#allocation22], 0
    %s42 = scalar_lea.sflag [#allocation22], 1
    %43 = vsyncpa %s42, 0
    loop: start=0, step=1, limit=6
    $region2: #{kozmo_decoder_forward.1} parent=1 // loop_pre_header
      _
    $region3: #{kozmo_decoder_forward.1} parent=1 // loop_header
      %s45 = sphi 0, %s49
      %p46 = scmp.ge.s32.totalorder %s45, 6
      %s52 = sphi 0, %s64
      %s53 = sphi 0, %s60
      %s54 = sphi 0, %s52
      %s55 = sphi 0, %s53
      %s56 = sphi 0, %s54
      %s57 = sphi 0, %s55
      %s67 = sphi 0, %s69
      %s70 = sphi 0, %s67
      %s71 = sphi 0, %s70
      %s87 = sphi 0, %s71
      %s93 = sphi 0, %s95
      %s96 = sphi 0, %s93
      %s97 = sphi 0, %s96
      %s113 = sphi 0, %s97
      %s119 = sphi 0, %s121
      %s122 = sphi 0, %s119
      %s123 = sphi 0, %s122
      %s139 = sphi 0, %s123
      %s145 = sphi 0, %s147
      %s148 = sphi 0, %s145
      %s149 = sphi 0, %s148
      %s165 = sphi 0, %s149
      %s171 = sphi 0, %s173
      %s174 = sphi 0, %s171
      %s175 = sphi 0, %s174
      %s191 = sphi 0, %s175
      %s197 = sphi 0, %s199
      %s200 = sphi 0, %s197
      %s201 = sphi 0, %s200
      %s217 = sphi 0, %s201
      %s223 = sphi 0, %s225
      %s226 = sphi 0, %s223
      %s227 = sphi 0, %s226
      %s243 = sphi 0, %s227
      %s249 = sphi 0, %s251
      %s252 = sphi 0, %s249
      %s253 = sphi 0, %s252
      %s269 = sphi 0, %s253
      %s275 = sphi 0, %s277
      %s278 = sphi 0, %s275
      %s279 = sphi 0, %s278
      %s295 = sphi 0, %s279
      %s301 = sphi 0, %s303
      %s304 = sphi 0, %s301
      %s305 = sphi 0, %s304
      %s321 = sphi 0, %s305
      %s327 = sphi 0, %s329
      %s330 = sphi 0, %s327
      %s331 = sphi 0, %s330
      %s347 = sphi 0, %s331
      %s353 = sphi 0, %s355
      %s356 = sphi 0, %s353
      %s357 = sphi 0, %s356
      %s373 = sphi 0, %s357
      %s379 = sphi 0, %s381
      %s382 = sphi 0, %s379
      %s383 = sphi 0, %s382
      %s399 = sphi 0, %s383
      %s403 = sphi 0, %s403
      %s405 = sphi 0, %s403
      %s406 = sphi 0, %s405
      %s420 = sphi 0, %s406
      %s424 = sphi 0, %s424
      %s426 = sphi 0, %s424
      %s427 = sphi 0, %s426
      %s441 = sphi 0, %s427
      %s445 = sphi 0, %s445
      %s447 = sphi 0, %s445
      %s448 = sphi 0, %s447
      %s462 = sphi 0, %s448
      %s466 = sphi 0, %s466
      %s468 = sphi 0, %s466
      %s469 = sphi 0, %s468
      %s483 = sphi 0, %s469
      %s487 = sphi 0, %s487
      %s489 = sphi 0, %s487
      %s490 = sphi 0, %s489
      %s504 = sphi 0, %s490
      %s508 = sphi 0, %s508
      %s510 = sphi 0, %s508
      %s511 = sphi 0, %s510
      %s525 = sphi 0, %s511
      %s529 = sphi 0, %s529
      %s531 = sphi 0, %s529
      %s532 = sphi 0, %s531
      %s546 = sphi 0, %s532
      %s550 = sphi 0, %s550
      %s552 = sphi 0, %s550
      %s553 = sphi 0, %s552
      %s567 = sphi 0, %s553
      %s573 = sphi 0, %s575
      %s576 = sphi 0, %s573
      %s577 = sphi 0, %s576
      %s593 = sphi 0, %s577
      %s599 = sphi 0, %s601
      %s602 = sphi 0, %s599
      %s603 = sphi 0, %s602
      %s619 = sphi 0, %s603
    $region4: #{kozmo_decoder_forward.1} parent=1 // loop_header_branch
      %48 = sbr.rel (%p46) target = $region8
    $region5: #{kozmo_decoder_forward.1} parent=1 // loop_body
      %s50 = ssub.s32 %s45, 1
      %s51 = ssub.s32 %s45, 2
      %s58 = sadd.s32 1, %s53
      %p59 = scmp.ge.s32.totalorder %s58, 2
      %s60 = scalar_select %p59, 0, %s58
      %s61 = sadd.s32 1, %s52
      %s62 = scalar_select %p59, %s61, %s52
      %p63 = scmp.ge.s32.totalorder %s62, 2
      %s64 = scalar_select %p63, 0, %s62
      %s65 = ssub.s32 %s52, %s64
      %p66 = scmp.eq.s32.totalorder %s65, 0
      %s68 = sadd.s32 %s67, 1
      %s69 = scalar_select %p66, %s67, %s68
      %p72 = pneg %p66
      %p73 = scmp.eq.s32.totalorder %s45, 3
      %p74 = por %p72, %p73
      %p75 = scmp.ne.s32.totalorder %s67, %s70
      %p76 = scmp.eq.s32.totalorder %s45, 0
      %p77 = por %p75, %p76
      %p78 = scmp.ne.s32.totalorder %s67, %s70
      %p79 = scmp.eq.s32.totalorder %s50, 3
      %p80 = por %p78, %p79
      %p81 = scmp.ne.s32.totalorder %s70, %s71
      %p82 = scmp.eq.s32.totalorder %s50, 0
      %p83 = por %p81, %p82
      %p84 = scmp.ne.s32.totalorder %s70, %s71
      %p85 = scmp.eq.s32.totalorder %s51, 3
      %p86 = por %p84, %p85
      %p88 = scmp.ne.s32.totalorder %s71, %s87
      %p89 = scmp.eq.s32.totalorder %s51, 0
      %p90 = por %p88, %p89
      %s91 = ssub.s32 %s53, %s60
      %p92 = scmp.eq.s32.totalorder %s91, 0
      %s94 = sadd.s32 %s93, 1
      %s95 = scalar_select %p92, %s93, %s94
      %p98 = pneg %p92
      %p99 = scmp.eq.s32.totalorder %s45, 3
      %p100 = por %p98, %p99
      %p101 = scmp.ne.s32.totalorder %s93, %s96
      %p102 = scmp.eq.s32.totalorder %s45, 0
      %p103 = por %p101, %p102
      %p104 = scmp.ne.s32.totalorder %s93, %s96
      %p105 = scmp.eq.s32.totalorder %s50, 3
      %p106 = por %p104, %p105
      %p107 = scmp.ne.s32.totalorder %s96, %s97
      %p108 = scmp.eq.s32.totalorder %s50, 0
      %p109 = por %p107, %p108
      %p110 = scmp.ne.s32.totalorder %s96, %s97
      %p111 = scmp.eq.s32.totalorder %s51, 3
      %p112 = por %p110, %p111
      %p114 = scmp.ne.s32.totalorder %s97, %s113
      %p115 = scmp.eq.s32.totalorder %s51, 0
      %p116 = por %p114, %p115
      %s117 = ssub.s32 %s53, %s60
      %p118 = scmp.eq.s32.totalorder %s117, 0
      %s120 = sadd.s32 %s119, 1
      %s121 = scalar_select %p118, %s119, %s120
      %p124 = pneg %p118
      %p125 = scmp.eq.s32.totalorder %s45, 3
      %p126 = por %p124, %p125
      %p127 = scmp.ne.s32.totalorder %s119, %s122
      %p128 = scmp.eq.s32.totalorder %s45, 0
      %p129 = por %p127, %p128
      %p130 = scmp.ne.s32.totalorder %s119, %s122
      %p131 = scmp.eq.s32.totalorder %s50, 3
      %p132 = por %p130, %p131
      %p133 = scmp.ne.s32.totalorder %s122, %s123
      %p134 = scmp.eq.s32.totalorder %s50, 0
      %p135 = por %p133, %p134
      %p136 = scmp.ne.s32.totalorder %s122, %s123
      %p137 = scmp.eq.s32.totalorder %s51, 3
      %p138 = por %p136, %p137
      %p140 = scmp.ne.s32.totalorder %s123, %s139
      %p141 = scmp.eq.s32.totalorder %s51, 0
      %p142 = por %p140, %p141
      %s143 = ssub.s32 %s53, %s60
      %p144 = scmp.eq.s32.totalorder %s143, 0
      %s146 = sadd.s32 %s145, 1
      %s147 = scalar_select %p144, %s145, %s146
      %p150 = pneg %p144
      %p151 = scmp.eq.s32.totalorder %s45, 3
      %p152 = por %p150, %p151
      %p153 = scmp.ne.s32.totalorder %s145, %s148
      %p154 = scmp.eq.s32.totalorder %s45, 0
      %p155 = por %p153, %p154
      %p156 = scmp.ne.s32.totalorder %s145, %s148
      %p157 = scmp.eq.s32.totalorder %s50, 3
      %p158 = por %p156, %p157
      %p159 = scmp.ne.s32.totalorder %s148, %s149
      %p160 = scmp.eq.s32.totalorder %s50, 0
      %p161 = por %p159, %p160
      %p162 = scmp.ne.s32.totalorder %s148, %s149
      %p163 = scmp.eq.s32.totalorder %s51, 3
      %p164 = por %p162, %p163
      %p166 = scmp.ne.s32.totalorder %s149, %s165
      %p167 = scmp.eq.s32.totalorder %s51, 0
      %p168 = por %p166, %p167
      %s169 = ssub.s32 %s53, %s60
      %p170 = scmp.eq.s32.totalorder %s169, 0
      %s172 = sadd.s32 %s171, 1
      %s173 = scalar_select %p170, %s171, %s172
      %p176 = pneg %p170
      %p177 = scmp.eq.s32.totalorder %s45, 3
      %p178 = por %p176, %p177
      %p179 = scmp.ne.s32.totalorder %s171, %s174
      %p180 = scmp.eq.s32.totalorder %s45, 0
      %p181 = por %p179, %p180
      %p182 = scmp.ne.s32.totalorder %s171, %s174
      %p183 = scmp.eq.s32.totalorder %s50, 3
      %p184 = por %p182, %p183
      %p185 = scmp.ne.s32.totalorder %s174, %s175
      %p186 = scmp.eq.s32.totalorder %s50, 0
      %p187 = por %p185, %p186
      %p188 = scmp.ne.s32.totalorder %s174, %s175
      %p189 = scmp.eq.s32.totalorder %s51, 3
      %p190 = por %p188, %p189
      %p192 = scmp.ne.s32.totalorder %s175, %s191
      %p193 = scmp.eq.s32.totalorder %s51, 0
      %p194 = por %p192, %p193
      %s195 = ssub.s32 %s53, %s60
      %p196 = scmp.eq.s32.totalorder %s195, 0
      %s198 = sadd.s32 %s197, 1
      %s199 = scalar_select %p196, %s197, %s198
      %p202 = pneg %p196
      %p203 = scmp.eq.s32.totalorder %s45, 3
      %p204 = por %p202, %p203
      %p205 = scmp.ne.s32.totalorder %s197, %s200
      %p206 = scmp.eq.s32.totalorder %s45, 0
      %p207 = por %p205, %p206
      %p208 = scmp.ne.s32.totalorder %s197, %s200
      %p209 = scmp.eq.s32.totalorder %s50, 3
      %p210 = por %p208, %p209
      %p211 = scmp.ne.s32.totalorder %s200, %s201
      %p212 = scmp.eq.s32.totalorder %s50, 0
      %p213 = por %p211, %p212
      %p214 = scmp.ne.s32.totalorder %s200, %s201
      %p215 = scmp.eq.s32.totalorder %s51, 3
      %p216 = por %p214, %p215
      %p218 = scmp.ne.s32.totalorder %s201, %s217
      %p219 = scmp.eq.s32.totalorder %s51, 0
      %p220 = por %p218, %p219
      %s221 = ssub.s32 %s53, %s60
      %p222 = scmp.eq.s32.totalorder %s221, 0
      %s224 = sadd.s32 %s223, 1
      %s225 = scalar_select %p222, %s223, %s224
      %p228 = pneg %p222
      %p229 = scmp.eq.s32.totalorder %s45, 3
      %p230 = por %p228, %p229
      %p231 = scmp.ne.s32.totalorder %s223, %s226
      %p232 = scmp.eq.s32.totalorder %s45, 0
      %p233 = por %p231, %p232
      %p234 = scmp.ne.s32.totalorder %s223, %s226
      %p235 = scmp.eq.s32.totalorder %s50, 3
      %p236 = por %p234, %p235
      %p237 = scmp.ne.s32.totalorder %s226, %s227
      %p238 = scmp.eq.s32.totalorder %s50, 0
      %p239 = por %p237, %p238
      %p240 = scmp.ne.s32.totalorder %s226, %s227
      %p241 = scmp.eq.s32.totalorder %s51, 3
      %p242 = por %p240, %p241
      %p244 = scmp.ne.s32.totalorder %s227, %s243
      %p245 = scmp.eq.s32.totalorder %s51, 0
      %p246 = por %p244, %p245
      %s247 = ssub.s32 %s53, %s60
      %p248 = scmp.eq.s32.totalorder %s247, 0
      %s250 = sadd.s32 %s249, 1
      %s251 = scalar_select %p248, %s249, %s250
      %p254 = pneg %p248
      %p255 = scmp.eq.s32.totalorder %s45, 3
      %p256 = por %p254, %p255
      %p257 = scmp.ne.s32.totalorder %s249, %s252
      %p258 = scmp.eq.s32.totalorder %s45, 0
      %p259 = por %p257, %p258
      %p260 = scmp.ne.s32.totalorder %s249, %s252
      %p261 = scmp.eq.s32.totalorder %s50, 3
      %p262 = por %p260, %p261
      %p263 = scmp.ne.s32.totalorder %s252, %s253
      %p264 = scmp.eq.s32.totalorder %s50, 0
      %p265 = por %p263, %p264
      %p266 = scmp.ne.s32.totalorder %s252, %s253
      %p267 = scmp.eq.s32.totalorder %s51, 3
      %p268 = por %p266, %p267
      %p270 = scmp.ne.s32.totalorder %s253, %s269
      %p271 = scmp.eq.s32.totalorder %s51, 0
      %p272 = por %p270, %p271
      %s273 = ssub.s32 %s53, %s60
      %p274 = scmp.eq.s32.totalorder %s273, 0
      %s276 = sadd.s32 %s275, 1
      %s277 = scalar_select %p274, %s275, %s276
      %p280 = pneg %p274
      %p281 = scmp.eq.s32.totalorder %s45, 3
      %p282 = por %p280, %p281
      %p283 = scmp.ne.s32.totalorder %s275, %s278
      %p284 = scmp.eq.s32.totalorder %s45, 0
      %p285 = por %p283, %p284
      %p286 = scmp.ne.s32.totalorder %s275, %s278
      %p287 = scmp.eq.s32.totalorder %s50, 3
      %p288 = por %p286, %p287
      %p289 = scmp.ne.s32.totalorder %s278, %s279
      %p290 = scmp.eq.s32.totalorder %s50, 0
      %p291 = por %p289, %p290
      %p292 = scmp.ne.s32.totalorder %s278, %s279
      %p293 = scmp.eq.s32.totalorder %s51, 3
      %p294 = por %p292, %p293
      %p296 = scmp.ne.s32.totalorder %s279, %s295
      %p297 = scmp.eq.s32.totalorder %s51, 0
      %p298 = por %p296, %p297
      %s299 = ssub.s32 %s53, %s60
      %p300 = scmp.eq.s32.totalorder %s299, 0
      %s302 = sadd.s32 %s301, 1
      %s303 = scalar_select %p300, %s301, %s302
      %p306 = pneg %p300
      %p307 = scmp.eq.s32.totalorder %s45, 3
      %p308 = por %p306, %p307
      %p309 = scmp.ne.s32.totalorder %s301, %s304
      %p310 = scmp.eq.s32.totalorder %s45, 0
      %p311 = por %p309, %p310
      %p312 = scmp.ne.s32.totalorder %s301, %s304
      %p313 = scmp.eq.s32.totalorder %s50, 3
      %p314 = por %p312, %p313
      %p315 = scmp.ne.s32.totalorder %s304, %s305
      %p316 = scmp.eq.s32.totalorder %s50, 0
      %p317 = por %p315, %p316
      %p318 = scmp.ne.s32.totalorder %s304, %s305
      %p319 = scmp.eq.s32.totalorder %s51, 3
      %p320 = por %p318, %p319
      %p322 = scmp.ne.s32.totalorder %s305, %s321
      %p323 = scmp.eq.s32.totalorder %s51, 0
      %p324 = por %p322, %p323
      %s325 = ssub.s32 %s53, %s60
      %p326 = scmp.eq.s32.totalorder %s325, 0
      %s328 = sadd.s32 %s327, 1
      %s329 = scalar_select %p326, %s327, %s328
      %p332 = pneg %p326
      %p333 = scmp.eq.s32.totalorder %s45, 3
      %p334 = por %p332, %p333
      %p335 = scmp.ne.s32.totalorder %s327, %s330
      %p336 = scmp.eq.s32.totalorder %s45, 0
      %p337 = por %p335, %p336
      %p338 = scmp.ne.s32.totalorder %s327, %s330
      %p339 = scmp.eq.s32.totalorder %s50, 3
      %p340 = por %p338, %p339
      %p341 = scmp.ne.s32.totalorder %s330, %s331
      %p342 = scmp.eq.s32.totalorder %s50, 0
      %p343 = por %p341, %p342
      %p344 = scmp.ne.s32.totalorder %s330, %s331
      %p345 = scmp.eq.s32.totalorder %s51, 3
      %p346 = por %p344, %p345
      %p348 = scmp.ne.s32.totalorder %s331, %s347
      %p349 = scmp.eq.s32.totalorder %s51, 0
      %p350 = por %p348, %p349
      %s351 = ssub.s32 %s53, %s60
      %p352 = scmp.eq.s32.totalorder %s351, 0
      %s354 = sadd.s32 %s353, 1
      %s355 = scalar_select %p352, %s353, %s354
      %p358 = pneg %p352
      %p359 = scmp.eq.s32.totalorder %s45, 3
      %p360 = por %p358, %p359
      %p361 = scmp.ne.s32.totalorder %s353, %s356
      %p362 = scmp.eq.s32.totalorder %s45, 0
      %p363 = por %p361, %p362
      %p364 = scmp.ne.s32.totalorder %s353, %s356
      %p365 = scmp.eq.s32.totalorder %s50, 3
      %p366 = por %p364, %p365
      %p367 = scmp.ne.s32.totalorder %s356, %s357
      %p368 = scmp.eq.s32.totalorder %s50, 0
      %p369 = por %p367, %p368
      %p370 = scmp.ne.s32.totalorder %s356, %s357
      %p371 = scmp.eq.s32.totalorder %s51, 3
      %p372 = por %p370, %p371
      %p374 = scmp.ne.s32.totalorder %s357, %s373
      %p375 = scmp.eq.s32.totalorder %s51, 0
      %p376 = por %p374, %p375
      %s377 = ssub.s32 %s53, %s60
      %p378 = scmp.eq.s32.totalorder %s377, 0
      %s380 = sadd.s32 %s379, 1
      %s381 = scalar_select %p378, %s379, %s380
      %p384 = pneg %p378
      %p385 = scmp.eq.s32.totalorder %s45, 3
      %p386 = por %p384, %p385
      %p387 = scmp.ne.s32.totalorder %s379, %s382
      %p388 = scmp.eq.s32.totalorder %s45, 0
      %p389 = por %p387, %p388
      %p390 = scmp.ne.s32.totalorder %s379, %s382
      %p391 = scmp.eq.s32.totalorder %s50, 3
      %p392 = por %p390, %p391
      %p393 = scmp.ne.s32.totalorder %s382, %s383
      %p394 = scmp.eq.s32.totalorder %s50, 0
      %p395 = por %p393, %p394
      %p396 = scmp.ne.s32.totalorder %s382, %s383
      %p397 = scmp.eq.s32.totalorder %s51, 3
      %p398 = por %p396, %p397
      %p400 = scmp.ne.s32.totalorder %s383, %s399
      %p401 = scmp.eq.s32.totalorder %s51, 0
      %p402 = por %p400, %p401
      %s404 = sadd.s32 %s403, 1
      %p407 = scmp.eq.s32.totalorder %s45, 3
      %p408 = scmp.ne.s32.totalorder %s403, %s405
      %p409 = scmp.eq.s32.totalorder %s45, 0
      %p410 = por %p408, %p409
      %p411 = scmp.ne.s32.totalorder %s403, %s405
      %p412 = scmp.eq.s32.totalorder %s50, 3
      %p413 = por %p411, %p412
      %p414 = scmp.ne.s32.totalorder %s405, %s406
      %p415 = scmp.eq.s32.totalorder %s50, 0
      %p416 = por %p414, %p415
      %p417 = scmp.ne.s32.totalorder %s405, %s406
      %p418 = scmp.eq.s32.totalorder %s51, 3
      %p419 = por %p417, %p418
      %p421 = scmp.ne.s32.totalorder %s406, %s420
      %p422 = scmp.eq.s32.totalorder %s51, 0
      %p423 = por %p421, %p422
      %s425 = sadd.s32 %s424, 1
      %p428 = scmp.eq.s32.totalorder %s45, 3
      %p429 = scmp.ne.s32.totalorder %s424, %s426
      %p430 = scmp.eq.s32.totalorder %s45, 0
      %p431 = por %p429, %p430
      %p432 = scmp.ne.s32.totalorder %s424, %s426
      %p433 = scmp.eq.s32.totalorder %s50, 3
      %p434 = por %p432, %p433
      %p435 = scmp.ne.s32.totalorder %s426, %s427
      %p436 = scmp.eq.s32.totalorder %s50, 0
      %p437 = por %p435, %p436
      %p438 = scmp.ne.s32.totalorder %s426, %s427
      %p439 = scmp.eq.s32.totalorder %s51, 3
      %p440 = por %p438, %p439
      %p442 = scmp.ne.s32.totalorder %s427, %s441
      %p443 = scmp.eq.s32.totalorder %s51, 0
      %p444 = por %p442, %p443
      %s446 = sadd.s32 %s445, 1
      %p449 = scmp.eq.s32.totalorder %s45, 3
      %p450 = scmp.ne.s32.totalorder %s445, %s447
      %p451 = scmp.eq.s32.totalorder %s45, 0
      %p452 = por %p450, %p451
      %p453 = scmp.ne.s32.totalorder %s445, %s447
      %p454 = scmp.eq.s32.totalorder %s50, 3
      %p455 = por %p453, %p454
      %p456 = scmp.ne.s32.totalorder %s447, %s448
      %p457 = scmp.eq.s32.totalorder %s50, 0
      %p458 = por %p456, %p457
      %p459 = scmp.ne.s32.totalorder %s447, %s448
      %p460 = scmp.eq.s32.totalorder %s51, 3
      %p461 = por %p459, %p460
      %p463 = scmp.ne.s32.totalorder %s448, %s462
      %p464 = scmp.eq.s32.totalorder %s51, 0
      %p465 = por %p463, %p464
      %s467 = sadd.s32 %s466, 1
      %p470 = scmp.eq.s32.totalorder %s45, 3
      %p471 = scmp.ne.s32.totalorder %s466, %s468
      %p472 = scmp.eq.s32.totalorder %s45, 0
      %p473 = por %p471, %p472
      %p474 = scmp.ne.s32.totalorder %s466, %s468
      %p475 = scmp.eq.s32.totalorder %s50, 3
      %p476 = por %p474, %p475
      %p477 = scmp.ne.s32.totalorder %s468, %s469
      %p478 = scmp.eq.s32.totalorder %s50, 0
      %p479 = por %p477, %p478
      %p480 = scmp.ne.s32.totalorder %s468, %s469
      %p481 = scmp.eq.s32.totalorder %s51, 3
      %p482 = por %p480, %p481
      %p484 = scmp.ne.s32.totalorder %s469, %s483
      %p485 = scmp.eq.s32.totalorder %s51, 0
      %p486 = por %p484, %p485
      %s488 = sadd.s32 %s487, 1
      %p491 = scmp.eq.s32.totalorder %s45, 3
      %p492 = scmp.ne.s32.totalorder %s487, %s489
      %p493 = scmp.eq.s32.totalorder %s45, 0
      %p494 = por %p492, %p493
      %p495 = scmp.ne.s32.totalorder %s487, %s489
      %p496 = scmp.eq.s32.totalorder %s50, 3
      %p497 = por %p495, %p496
      %p498 = scmp.ne.s32.totalorder %s489, %s490
      %p499 = scmp.eq.s32.totalorder %s50, 0
      %p500 = por %p498, %p499
      %p501 = scmp.ne.s32.totalorder %s489, %s490
      %p502 = scmp.eq.s32.totalorder %s51, 3
      %p503 = por %p501, %p502
      %p505 = scmp.ne.s32.totalorder %s490, %s504
      %p506 = scmp.eq.s32.totalorder %s51, 0
      %p507 = por %p505, %p506
      %s509 = sadd.s32 %s508, 1
      %p512 = scmp.eq.s32.totalorder %s45, 3
      %p513 = scmp.ne.s32.totalorder %s508, %s510
      %p514 = scmp.eq.s32.totalorder %s45, 0
      %p515 = por %p513, %p514
      %p516 = scmp.ne.s32.totalorder %s508, %s510
      %p517 = scmp.eq.s32.totalorder %s50, 3
      %p518 = por %p516, %p517
      %p519 = scmp.ne.s32.totalorder %s510, %s511
      %p520 = scmp.eq.s32.totalorder %s50, 0
      %p521 = por %p519, %p520
      %p522 = scmp.ne.s32.totalorder %s510, %s511
      %p523 = scmp.eq.s32.totalorder %s51, 3
      %p524 = por %p522, %p523
      %p526 = scmp.ne.s32.totalorder %s511, %s525
      %p527 = scmp.eq.s32.totalorder %s51, 0
      %p528 = por %p526, %p527
      %s530 = sadd.s32 %s529, 1
      %p533 = scmp.eq.s32.totalorder %s45, 3
      %p534 = scmp.ne.s32.totalorder %s529, %s531
      %p535 = scmp.eq.s32.totalorder %s45, 0
      %p536 = por %p534, %p535
      %p537 = scmp.ne.s32.totalorder %s529, %s531
      %p538 = scmp.eq.s32.totalorder %s50, 3
      %p539 = por %p537, %p538
      %p540 = scmp.ne.s32.totalorder %s531, %s532
      %p541 = scmp.eq.s32.totalorder %s50, 0
      %p542 = por %p540, %p541
      %p543 = scmp.ne.s32.totalorder %s531, %s532
      %p544 = scmp.eq.s32.totalorder %s51, 3
      %p545 = por %p543, %p544
      %p547 = scmp.ne.s32.totalorder %s532, %s546
      %p548 = scmp.eq.s32.totalorder %s51, 0
      %p549 = por %p547, %p548
      %s551 = sadd.s32 %s550, 1
      %p554 = scmp.eq.s32.totalorder %s45, 3
      %p555 = scmp.ne.s32.totalorder %s550, %s552
      %p556 = scmp.eq.s32.totalorder %s45, 0
      %p557 = por %p555, %p556
      %p558 = scmp.ne.s32.totalorder %s550, %s552
      %p559 = scmp.eq.s32.totalorder %s50, 3
      %p560 = por %p558, %p559
      %p561 = scmp.ne.s32.totalorder %s552, %s553
      %p562 = scmp.eq.s32.totalorder %s50, 0
      %p563 = por %p561, %p562
      %p564 = scmp.ne.s32.totalorder %s552, %s553
      %p565 = scmp.eq.s32.totalorder %s51, 3
      %p566 = por %p564, %p565
      %p568 = scmp.ne.s32.totalorder %s553, %s567
      %p569 = scmp.eq.s32.totalorder %s51, 0
      %p570 = por %p568, %p569
      %s571 = ssub.s32 %s52, %s64
      %p572 = scmp.eq.s32.totalorder %s571, 0
      %s574 = sadd.s32 %s573, 1
      %s575 = scalar_select %p572, %s573, %s574
      %p578 = pneg %p572
      %p579 = scmp.eq.s32.totalorder %s45, 3
      %p580 = por %p578, %p579
      %p581 = scmp.ne.s32.totalorder %s573, %s576
      %p582 = scmp.eq.s32.totalorder %s45, 0
      %p583 = por %p581, %p582
      %p584 = scmp.ne.s32.totalorder %s573, %s576
      %p585 = scmp.eq.s32.totalorder %s50, 3
      %p586 = por %p584, %p585
      %p587 = scmp.ne.s32.totalorder %s576, %s577
      %p588 = scmp.eq.s32.totalorder %s50, 0
      %p589 = por %p587, %p588
      %p590 = scmp.ne.s32.totalorder %s576, %s577
      %p591 = scmp.eq.s32.totalorder %s51, 3
      %p592 = por %p590, %p591
      %p594 = scmp.ne.s32.totalorder %s577, %s593
      %p595 = scmp.eq.s32.totalorder %s51, 0
      %p596 = por %p594, %p595
      %s597 = ssub.s32 %s52, %s64
      %p598 = scmp.eq.s32.totalorder %s597, 0
      %s600 = sadd.s32 %s599, 1
      %s601 = scalar_select %p598, %s599, %s600
      %p604 = pneg %p598
      %p605 = scmp.eq.s32.totalorder %s45, 3
      %p606 = por %p604, %p605
      %p607 = scmp.ne.s32.totalorder %s599, %s602
      %p608 = scmp.eq.s32.totalorder %s45, 0
      %p609 = por %p607, %p608
      %p610 = scmp.ne.s32.totalorder %s599, %s602
      %p611 = scmp.eq.s32.totalorder %s50, 3
      %p612 = por %p610, %p611
      %p613 = scmp.ne.s32.totalorder %s602, %s603
      %p614 = scmp.eq.s32.totalorder %s50, 0
      %p615 = por %p613, %p614
      %p616 = scmp.ne.s32.totalorder %s602, %s603
      %p617 = scmp.eq.s32.totalorder %s51, 3
      %p618 = por %p616, %p617
      %p620 = scmp.ne.s32.totalorder %s603, %s619
      %p621 = scmp.eq.s32.totalorder %s51, 0
      %p622 = por %p620, %p621
      %p623 = scmp.le.s32.totalorder 1, %s45
      %p624 = scmp.lt.s32.totalorder %s45, 5
      %p625 = pnand %p623, %p624
      %p626 = pneg %p625
      // Predicated region
      $region9: #{kozmo_decoder_forward.1} parent=5 // pred_check
        _
      $region10: #{kozmo_decoder_forward.1} parent=5 // pred_check_branch
        %628 = sbr.rel (%p625) target = $region12
      $region11: #{kozmo_decoder_forward.1} parent=5 // pred_region
        %s629 = ssub.s32 %s45, 1
        // Predicated region
        $region13: #{kozmo_decoder_forward.1} parent=11 // pred_check
          %p630 = pneg %p416
        $region14: #{kozmo_decoder_forward.1} parent=11 // pred_check_branch
          %632 = sbr.rel (%p630) target = $region16
        $region15: #{kozmo_decoder_forward.1} parent=11 // pred_region
          %s634 = ssub.s32 256, 256
          %635 = vsyncadd [#allocation7], %s634
          %s636 = sshll.u32 [#allocation8], 4
          %s637 = int_to_ptr.vmem [resolvable:$true] %s636
          %642 = dma.hbm_to_vmem [thread:$0]  %s13, 256, %s637, [#allocation7], 64, 64, 4
        $region16: #{kozmo_decoder_forward.1} parent=11 // pred_fallthru
          _
        // Predicated region
        $region17: #{kozmo_decoder_forward.1} parent=11 // pred_check
          %p643 = pneg %p437
        $region18: #{kozmo_decoder_forward.1} parent=11 // pred_check_branch
          %645 = sbr.rel (%p643) target = $region20
        $region19: #{kozmo_decoder_forward.1} parent=11 // pred_region
          %s647 = ssub.s32 256, 256
          %648 = vsyncadd [#allocation10], %s647
          %s649 = sshll.u32 [#allocation9], 4
          %s650 = int_to_ptr.vmem [resolvable:$true] %s649
          %655 = dma.hbm_to_vmem [thread:$0]  %s14, 256, %s650, [#allocation10], 64, 64, 4
        $region20: #{kozmo_decoder_forward.1} parent=11 // pred_fallthru
          _
        // Predicated region
        $region21: #{kozmo_decoder_forward.1} parent=11 // pred_check
          %p656 = pneg %p458
        $region22: #{kozmo_decoder_forward.1} parent=11 // pred_check_branch
          %658 = sbr.rel (%p656) target = $region24
        $region23: #{kozmo_decoder_forward.1} parent=11 // pred_region
          %s660 = ssub.s32 256, 256
          %661 = vsyncadd [#allocation10], %s660
          %s662 = sshll.u32 [#allocation11], 4
          %s663 = int_to_ptr.vmem [resolvable:$true] %s662
          %668 = dma.hbm_to_vmem [thread:$0]  %s15, 256, %s663, [#allocation10], 64, 64, 4
        $region24: #{kozmo_decoder_forward.1} parent=11 // pred_fallthru
          _
        // Predicated region
        $region25: #{kozmo_decoder_forward.1} parent=11 // pred_check
          %p669 = pneg %p479
        $region26: #{kozmo_decoder_forward.1} parent=11 // pred_check_branch
          %671 = sbr.rel (%p669) target = $region28
        $region27: #{kozmo_decoder_forward.1} parent=11 // pred_region
          %s673 = ssub.s32 16, 16
          %674 = vsyncadd [#allocation13], %s673
          %s676 = sshll.u32 [#allocation12], 4
          %s677 = int_to_ptr.vmem [resolvable:$true] %s676
          %679 = dma.hbm_to_vmem [thread:$0]  %s16, 16, %s677, [#allocation13]
        $region28: #{kozmo_decoder_forward.1} parent=11 // pred_fallthru
          _
        // Predicated region
        $region29: #{kozmo_decoder_forward.1} parent=11 // pred_check
          %p680 = pneg %p500
        $region30: #{kozmo_decoder_forward.1} parent=11 // pred_check_branch
          %682 = sbr.rel (%p680) target = $region32
        $region31: #{kozmo_decoder_forward.1} parent=11 // pred_region
          %s684 = ssub.s32 16, 16
          %685 = vsyncadd [#allocation13], %s684
          %s687 = sshll.u32 [#allocation14], 4
          %s688 = int_to_ptr.vmem [resolvable:$true] %s687
          %690 = dma.hbm_to_vmem [thread:$0]  %s17, 16, %s688, [#allocation13]
        $region32: #{kozmo_decoder_forward.1} parent=11 // pred_fallthru
          _
        // Predicated region
        $region33: #{kozmo_decoder_forward.1} parent=11 // pred_check
          %p691 = pneg %p521
        $region34: #{kozmo_decoder_forward.1} parent=11 // pred_check_branch
          %693 = sbr.rel (%p691) target = $region36
        $region35: #{kozmo_decoder_forward.1} parent=11 // pred_region
          %s695 = ssub.s32 16, 16
          %696 = vsyncadd [#allocation16], %s695
          %s698 = sshll.u32 [#allocation15], 4
          %s699 = int_to_ptr.vmem [resolvable:$true] %s698
          %701 = dma.hbm_to_vmem [thread:$0]  %s18, 16, %s699, [#allocation16]
        $region36: #{kozmo_decoder_forward.1} parent=11 // pred_fallthru
          _
        // Predicated region
        $region37: #{kozmo_decoder_forward.1} parent=11 // pred_check
          %p702 = pneg %p542
        $region38: #{kozmo_decoder_forward.1} parent=11 // pred_check_branch
          %704 = sbr.rel (%p702) target = $region40
        $region39: #{kozmo_decoder_forward.1} parent=11 // pred_region
          %s706 = ssub.s32 256, 256
          %707 = vsyncadd [#allocation16], %s706
          %s708 = sshll.u32 [#allocation17], 4
          %s709 = int_to_ptr.vmem [resolvable:$true] %s708
          %714 = dma.hbm_to_vmem [thread:$0]  %s19, 256, %s709, [#allocation16], 64, 64, 4
        $region40: #{kozmo_decoder_forward.1} parent=11 // pred_fallthru
          _
        // Predicated region
        $region41: #{kozmo_decoder_forward.1} parent=11 // pred_check
          %p715 = pneg %p563
        $region42: #{kozmo_decoder_forward.1} parent=11 // pred_check_branch
          %717 = sbr.rel (%p715) target = $region44
        $region43: #{kozmo_decoder_forward.1} parent=11 // pred_region
          %s719 = ssub.s32 16, 16
          %720 = vsyncadd [#allocation19], %s719
          %s722 = sshll.u32 [#allocation18], 4
          %s723 = int_to_ptr.vmem [resolvable:$true] %s722
          %725 = dma.hbm_to_vmem [thread:$0]  %s20, 16, %s723, [#allocation19]
        $region44: #{kozmo_decoder_forward.1} parent=11 // pred_fallthru
          _
      $region12: #{kozmo_decoder_forward.1} parent=5 // pred_fallthru
        _
      %p726 = scmp.lt.s32.totalorder %s45, 4
      // Predicated region
      $region45: #{kozmo_decoder_forward.1} parent=5 // pred_check
        %p727 = pneg %p726
      $region46: #{kozmo_decoder_forward.1} parent=5 // pred_check_branch
        %729 = sbr.rel (%p727) target = $region48
      $region47: #{kozmo_decoder_forward.1} parent=5 // pred_region
        // Predicated region
        $region49: #{kozmo_decoder_forward.1} parent=47 // pred_check
          %p730 = pneg %p77
        $region50: #{kozmo_decoder_forward.1} parent=47 // pred_check_branch
          %732 = sbr.rel (%p730) target = $region52
        $region51: #{kozmo_decoder_forward.1} parent=47 // pred_region
          %p733 = scmp.lt.s32.totalorder %s52, 1
          %s734 = scalar_select %p733, %s52, 1
          %s735 = smul.addr %s734, 8
          %s736 = scalar_lea.vmem %s0, %s735
        $region52: #{kozmo_decoder_forward.1} parent=47 // pred_fallthru
          _
        // Predicated region
        $region53: #{kozmo_decoder_forward.1} parent=47 // pred_check
          %p737 = pneg %p103
        $region54: #{kozmo_decoder_forward.1} parent=47 // pred_check_branch
          %739 = sbr.rel (%p737) target = $region56
        $region55: #{kozmo_decoder_forward.1} parent=47 // pred_region
          %p740 = scmp.lt.s32.totalorder %s53, 1
          %s741 = scalar_select %p740, %s53, 1
          %s742 = smul.addr %s741, 4
          %s743 = smul.addr %s742, 4
          %s744 = scalar_lea.vmem %s1, %s743
        $region56: #{kozmo_decoder_forward.1} parent=47 // pred_fallthru
          _
        // Predicated region
        $region57: #{kozmo_decoder_forward.1} parent=47 // pred_check
          %p745 = pneg %p129
        $region58: #{kozmo_decoder_forward.1} parent=47 // pred_check_branch
          %747 = sbr.rel (%p745) target = $region60
        $region59: #{kozmo_decoder_forward.1} parent=47 // pred_region
          %p748 = scmp.lt.s32.totalorder %s53, 1
          %s749 = scalar_select %p748, %s53, 1
          %s750 = scalar_lea.vmem %s2, %s749
        $region60: #{kozmo_decoder_forward.1} parent=47 // pred_fallthru
          _
        // Predicated region
        $region61: #{kozmo_decoder_forward.1} parent=47 // pred_check
          %p751 = pneg %p155
        $region62: #{kozmo_decoder_forward.1} parent=47 // pred_check_branch
          %753 = sbr.rel (%p751) target = $region64
        $region63: #{kozmo_decoder_forward.1} parent=47 // pred_region
          %p754 = scmp.lt.s32.totalorder %s53, 1
          %s755 = scalar_select %p754, %s53, 1
          %s756 = smul.addr %s755, 4
          %s757 = smul.addr %s756, 4
          %s758 = scalar_lea.vmem %s3, %s757
        $region64: #{kozmo_decoder_forward.1} parent=47 // pred_fallthru
          _
        // Predicated region
        $region65: #{kozmo_decoder_forward.1} parent=47 // pred_check
          %p759 = pneg %p181
        $region66: #{kozmo_decoder_forward.1} parent=47 // pred_check_branch
          %761 = sbr.rel (%p759) target = $region68
        $region67: #{kozmo_decoder_forward.1} parent=47 // pred_region
          %p762 = scmp.lt.s32.totalorder %s53, 1
          %s763 = scalar_select %p762, %s53, 1
          %s764 = scalar_lea.vmem %s4, %s763
        $region68: #{kozmo_decoder_forward.1} parent=47 // pred_fallthru
          _
        // Predicated region
        $region69: #{kozmo_decoder_forward.1} parent=47 // pred_check
          %p765 = pneg %p207
        $region70: #{kozmo_decoder_forward.1} parent=47 // pred_check_branch
          %767 = sbr.rel (%p765) target = $region72
        $region71: #{kozmo_decoder_forward.1} parent=47 // pred_region
          %p768 = scmp.lt.s32.totalorder %s53, 1
          %s769 = scalar_select %p768, %s53, 1
          %s770 = scalar_lea.vmem %s5, %s769
        $region72: #{kozmo_decoder_forward.1} parent=47 // pred_fallthru
          _
        // Predicated region
        $region73: #{kozmo_decoder_forward.1} parent=47 // pred_check
          %p771 = pneg %p233
        $region74: #{kozmo_decoder_forward.1} parent=47 // pred_check_branch
          %773 = sbr.rel (%p771) target = $region76
        $region75: #{kozmo_decoder_forward.1} parent=47 // pred_region
          %p774 = scmp.lt.s32.totalorder %s53, 1
          %s775 = scalar_select %p774, %s53, 1
          %s776 = scalar_lea.vmem %s6, %s775
        $region76: #{kozmo_decoder_forward.1} parent=47 // pred_fallthru
          _
        // Predicated region
        $region77: #{kozmo_decoder_forward.1} parent=47 // pred_check
          %p777 = pneg %p259
        $region78: #{kozmo_decoder_forward.1} parent=47 // pred_check_branch
          %779 = sbr.rel (%p777) target = $region80
        $region79: #{kozmo_decoder_forward.1} parent=47 // pred_region
          %p780 = scmp.lt.s32.totalorder %s53, 1
          %s781 = scalar_select %p780, %s53, 1
          %s782 = smul.addr %s781, 4
          %s783 = smul.addr %s782, 4
          %s784 = scalar_lea.vmem %s7, %s783
        $region80: #{kozmo_decoder_forward.1} parent=47 // pred_fallthru
          _
        // Predicated region
        $region81: #{kozmo_decoder_forward.1} parent=47 // pred_check
          %p785 = pneg %p285
        $region82: #{kozmo_decoder_forward.1} parent=47 // pred_check_branch
          %787 = sbr.rel (%p785) target = $region84
        $region83: #{kozmo_decoder_forward.1} parent=47 // pred_region
          %p788 = scmp.lt.s32.totalorder %s53, 1
          %s789 = scalar_select %p788, %s53, 1
          %s790 = scalar_lea.vmem %s8, %s789
        $region84: #{kozmo_decoder_forward.1} parent=47 // pred_fallthru
          _
        // Predicated region
        $region85: #{kozmo_decoder_forward.1} parent=47 // pred_check
          %p791 = pneg %p311
        $region86: #{kozmo_decoder_forward.1} parent=47 // pred_check_branch
          %793 = sbr.rel (%p791) target = $region88
        $region87: #{kozmo_decoder_forward.1} parent=47 // pred_region
          %p794 = scmp.lt.s32.totalorder %s53, 1
          %s795 = scalar_select %p794, %s53, 1
          %s796 = smul.addr %s795, 8
          %s797 = smul.addr %s796, 4
          %s798 = scalar_lea.vmem %s9, %s797
        $region88: #{kozmo_decoder_forward.1} parent=47 // pred_fallthru
          _
        // Predicated region
        $region89: #{kozmo_decoder_forward.1} parent=47 // pred_check
          %p799 = pneg %p337
        $region90: #{kozmo_decoder_forward.1} parent=47 // pred_check_branch
          %801 = sbr.rel (%p799) target = $region92
        $region91: #{kozmo_decoder_forward.1} parent=47 // pred_region
          %p802 = scmp.lt.s32.totalorder %s53, 1
          %s803 = scalar_select %p802, %s53, 1
          %s804 = scalar_lea.vmem %s10, %s803
        $region92: #{kozmo_decoder_forward.1} parent=47 // pred_fallthru
          _
        // Predicated region
        $region93: #{kozmo_decoder_forward.1} parent=47 // pred_check
          %p805 = pneg %p363
        $region94: #{kozmo_decoder_forward.1} parent=47 // pred_check_branch
          %807 = sbr.rel (%p805) target = $region96
        $region95: #{kozmo_decoder_forward.1} parent=47 // pred_region
          %s808 = sand.u32 %s353, 1
          %s809 = scalar_lea.sflag [#allocation4], %s808
          %s810 = sand.u32 %s353, 1
          %s811 = scalar_lea.vmem [#allocation3], %s810
          %s813 = ssub.s32 16, 16
          %814 = vsyncadd %s809, %s813
          %s815 = smul.addr %s53, 16
          %s816 = scalar_lea.hbm %s11, %s815
          %s818 = sshll.u32 %s811, 4
          %s819 = int_to_ptr.vmem [resolvable:$true] %s818
          %821 = dma.hbm_to_vmem [thread:$0]  %s816, 16, %s819, %s809
        $region96: #{kozmo_decoder_forward.1} parent=47 // pred_fallthru
          _
        // Predicated region
        $region97: #{kozmo_decoder_forward.1} parent=47 // pred_check
          %p822 = pneg %p389
        $region98: #{kozmo_decoder_forward.1} parent=47 // pred_check_branch
          %824 = sbr.rel (%p822) target = $region100
        $region99: #{kozmo_decoder_forward.1} parent=47 // pred_region
          %s825 = sand.u32 %s45, 1
          %s826 = scalar_lea.sflag [#allocation7], %s825
          %s827 = sand.u32 %s379, 1
          %s828 = scalar_lea.vmem [#allocation6], %s827
          %s830 = ssub.s32 16, 16
          %831 = vsyncadd %s826, %s830
          %s832 = smul.addr %s53, 16
          %s833 = scalar_lea.hbm %s12, %s832
          %s835 = sshll.u32 %s828, 4
          %s836 = int_to_ptr.vmem [resolvable:$true] %s835
          %838 = dma.hbm_to_vmem [thread:$0]  %s833, 16, %s836, %s826
        $region100: #{kozmo_decoder_forward.1} parent=47 // pred_fallthru
          _
      $region48: #{kozmo_decoder_forward.1} parent=5 // pred_fallthru
        _
      %p839 = scmp.le.s32.totalorder 1, %s45
      %p840 = scmp.lt.s32.totalorder %s45, 5
      %p841 = pnand %p839, %p840
      %p842 = pneg %p841
      // Predicated region
      $region101: #{kozmo_decoder_forward.1} parent=5 // pred_check
        _
      $region102: #{kozmo_decoder_forward.1} parent=5 // pred_check_branch
        %844 = sbr.rel (%p841) target = $region104
      $region103: #{kozmo_decoder_forward.1} parent=5 // pred_region
        %s845 = ssub.s32 %s45, 1
        %s846 = sand.u32 %s356, 1
        %s847 = scalar_lea.sflag [#allocation4], %s846
        %s848 = sand.u32 %s356, 1
        %s849 = scalar_lea.vmem [#allocation3], %s848
        // Predicated region
        $region105: #{kozmo_decoder_forward.1} parent=103 // pred_check
          %p850 = pneg %p369
        $region106: #{kozmo_decoder_forward.1} parent=103 // pred_check_branch
          %852 = sbr.rel (%p850) target = $region108
        $region107: #{kozmo_decoder_forward.1} parent=103 // pred_region
          %853 = dma.done %s847, 16
        $region108: #{kozmo_decoder_forward.1} parent=103 // pred_fallthru
          _
        %s854 = sand.u32 %s50, 1
        %s855 = scalar_lea.sflag [#allocation7], %s854
        %s856 = sand.u32 %s382, 1
        %s857 = scalar_lea.vmem [#allocation6], %s856
        // Predicated region
        $region109: #{kozmo_decoder_forward.1} parent=103 // pred_check
          %p858 = pneg %p395
        $region110: #{kozmo_decoder_forward.1} parent=103 // pred_check_branch
          %860 = sbr.rel (%p858) target = $region112
        $region111: #{kozmo_decoder_forward.1} parent=103 // pred_region
          %861 = dma.done %s855, 16
        $region112: #{kozmo_decoder_forward.1} parent=103 // pred_fallthru
          _
        // Predicated region
        $region113: #{kozmo_decoder_forward.1} parent=103 // pred_check
          %p862 = pneg %p416
        $region114: #{kozmo_decoder_forward.1} parent=103 // pred_check_branch
          %864 = sbr.rel (%p862) target = $region116
        $region115: #{kozmo_decoder_forward.1} parent=103 // pred_region
          %865 = dma.done [#allocation7], 256
        $region116: #{kozmo_decoder_forward.1} parent=103 // pred_fallthru
          _
        // Predicated region
        $region117: #{kozmo_decoder_forward.1} parent=103 // pred_check
          %p866 = pneg %p437
        $region118: #{kozmo_decoder_forward.1} parent=103 // pred_check_branch
          %868 = sbr.rel (%p866) target = $region120
        $region119: #{kozmo_decoder_forward.1} parent=103 // pred_region
          %869 = dma.done [#allocation10], 256
        $region120: #{kozmo_decoder_forward.1} parent=103 // pred_fallthru
          _
        // Predicated region
        $region121: #{kozmo_decoder_forward.1} parent=103 // pred_check
          %p870 = pneg %p458
        $region122: #{kozmo_decoder_forward.1} parent=103 // pred_check_branch
          %872 = sbr.rel (%p870) target = $region124
        $region123: #{kozmo_decoder_forward.1} parent=103 // pred_region
          %873 = dma.done [#allocation10], 256
        $region124: #{kozmo_decoder_forward.1} parent=103 // pred_fallthru
          _
        // Predicated region
        $region125: #{kozmo_decoder_forward.1} parent=103 // pred_check
          %p874 = pneg %p479
        $region126: #{kozmo_decoder_forward.1} parent=103 // pred_check_branch
          %876 = sbr.rel (%p874) target = $region128
        $region127: #{kozmo_decoder_forward.1} parent=103 // pred_region
          %877 = dma.done [#allocation13], 16
        $region128: #{kozmo_decoder_forward.1} parent=103 // pred_fallthru
          _
        // Predicated region
        $region129: #{kozmo_decoder_forward.1} parent=103 // pred_check
          %p878 = pneg %p500
        $region130: #{kozmo_decoder_forward.1} parent=103 // pred_check_branch
          %880 = sbr.rel (%p878) target = $region132
        $region131: #{kozmo_decoder_forward.1} parent=103 // pred_region
          %881 = dma.done [#allocation13], 16
        $region132: #{kozmo_decoder_forward.1} parent=103 // pred_fallthru
          _
        // Predicated region
        $region133: #{kozmo_decoder_forward.1} parent=103 // pred_check
          %p882 = pneg %p521
        $region134: #{kozmo_decoder_forward.1} parent=103 // pred_check_branch
          %884 = sbr.rel (%p882) target = $region136
        $region135: #{kozmo_decoder_forward.1} parent=103 // pred_region
          %885 = dma.done [#allocation16], 16
        $region136: #{kozmo_decoder_forward.1} parent=103 // pred_fallthru
          _
        // Predicated region
        $region137: #{kozmo_decoder_forward.1} parent=103 // pred_check
          %p886 = pneg %p542
        $region138: #{kozmo_decoder_forward.1} parent=103 // pred_check_branch
          %888 = sbr.rel (%p886) target = $region140
        $region139: #{kozmo_decoder_forward.1} parent=103 // pred_region
          %889 = dma.done [#allocation16], 256
        $region140: #{kozmo_decoder_forward.1} parent=103 // pred_fallthru
          _
        // Predicated region
        $region141: #{kozmo_decoder_forward.1} parent=103 // pred_check
          %p890 = pneg %p563
        $region142: #{kozmo_decoder_forward.1} parent=103 // pred_check_branch
          %892 = sbr.rel (%p890) target = $region144
        $region143: #{kozmo_decoder_forward.1} parent=103 // pred_region
          %893 = dma.done [#allocation19], 16
        $region144: #{kozmo_decoder_forward.1} parent=103 // pred_fallthru
          _
        %p894 = scmp.lt.s32.totalorder %s54, 1
        %s895 = scalar_select %p894, %s54, 1
        %s896 = smul.addr %s895, 8
        %s897 = scalar_lea.vmem %s0, %s896
        %p898 = pneg %p83
        %p899 = pneg %p80
        %p900 = scmp.lt.s32.totalorder %s55, 1
        %s901 = scalar_select %p900, %s55, 1
        %s902 = smul.addr %s901, 4
        %s903 = smul.addr %s902, 4
        %s904 = scalar_lea.vmem %s1, %s903
        %p905 = pneg %p109
        %p906 = pneg %p106
        %p907 = scmp.lt.s32.totalorder %s55, 1
        %s908 = scalar_select %p907, %s55, 1
        %s909 = scalar_lea.vmem %s2, %s908
        %p910 = pneg %p135
        %p911 = pneg %p132
        %p912 = scmp.lt.s32.totalorder %s55, 1
        %s913 = scalar_select %p912, %s55, 1
        %s914 = smul.addr %s913, 4
        %s915 = smul.addr %s914, 4
        %s916 = scalar_lea.vmem %s3, %s915
        %p917 = pneg %p161
        %p918 = pneg %p158
        %p919 = scmp.lt.s32.totalorder %s55, 1
        %s920 = scalar_select %p919, %s55, 1
        %s921 = scalar_lea.vmem %s4, %s920
        %p922 = pneg %p187
        %p923 = pneg %p184
        %p924 = scmp.lt.s32.totalorder %s55, 1
        %s925 = scalar_select %p924, %s55, 1
        %s926 = scalar_lea.vmem %s5, %s925
        %p927 = pneg %p213
        %p928 = pneg %p210
        %p929 = scmp.lt.s32.totalorder %s55, 1
        %s930 = scalar_select %p929, %s55, 1
        %s931 = scalar_lea.vmem %s6, %s930
        %p932 = pneg %p239
        %p933 = pneg %p236
        %p934 = scmp.lt.s32.totalorder %s55, 1
        %s935 = scalar_select %p934, %s55, 1
        %s936 = smul.addr %s935, 4
        %s937 = smul.addr %s936, 4
        %s938 = scalar_lea.vmem %s7, %s937
        %p939 = pneg %p265
        %p940 = pneg %p262
        %p941 = scmp.lt.s32.totalorder %s55, 1
        %s942 = scalar_select %p941, %s55, 1
        %s943 = scalar_lea.vmem %s8, %s942
        %p944 = pneg %p291
        %p945 = pneg %p288
        %p946 = scmp.lt.s32.totalorder %s55, 1
        %s947 = scalar_select %p946, %s55, 1
        %s948 = smul.addr %s947, 8
        %s949 = smul.addr %s948, 4
        %s950 = scalar_lea.vmem %s9, %s949
        %p951 = pneg %p317
        %p952 = pneg %p314
        %p953 = scmp.lt.s32.totalorder %s55, 1
        %s954 = scalar_select %p953, %s55, 1
        %s955 = scalar_lea.vmem %s10, %s954
        %p956 = pneg %p343
        %p957 = pneg %p340
        %s958 = sand.u32 %s356, 1
        %s959 = scalar_lea.sflag [#allocation4], %s958
        %s960 = sand.u32 %s356, 1
        %s961 = scalar_lea.vmem [#allocation3], %s960
        %p962 = pneg %p369
        %p963 = pneg %p366
        %s964 = sand.u32 %s50, 1
        %s965 = scalar_lea.sflag [#allocation7], %s964
        %s966 = sand.u32 %s382, 1
        %s967 = scalar_lea.vmem [#allocation6], %s966
        %p968 = pneg %p395
        %p969 = pneg %p392
        %p970 = pneg %p416
        %p971 = pneg %p413
        %p972 = pneg %p437
        %p973 = pneg %p434
        %p974 = pneg %p458
        %p975 = pneg %p455
        %p976 = pneg %p479
        %p977 = pneg %p476
        %p978 = pneg %p500
        %p979 = pneg %p497
        %p980 = pneg %p521
        %p981 = pneg %p518
        %p982 = pneg %p542
        %p983 = pneg %p539
        %p984 = pneg %p563
        %p985 = pneg %p560
        %p986 = pneg %p589
        %p987 = pneg %p586
        %s988 = sand.u32 %s576, 1
        %s989 = scalar_lea.sflag [#allocation5], %s988
        %s990 = sand.u32 %s576, 1
        %s991 = smul.addr %s990, 8
        %s992 = scalar_lea.vmem [#allocation20], %s991
        %p993 = pneg %p615
        %p994 = pneg %p612
        %s995 = sand.u32 %s602, 1
        %s996 = scalar_lea.sflag [#allocation22], %s995
        %s997 = sand.u32 %s602, 1
        %s998 = smul.addr %s997, 8
        %s999 = scalar_lea.vmem [#allocation21], %s998
        %p1000 = scmp.lt.s32.totalorder %s54, 1
        %s1001 = scalar_select %p1000, %s54, 1
        %s1002 = smul.addr %s1001, 8
        %s1003 = scalar_lea.vmem %s0, %s1002
        %p1004 = scmp.lt.s32.totalorder %s55, 1
        %s1005 = scalar_select %p1004, %s55, 1
        %s1006 = smul.addr %s1005, 4
        %s1007 = smul.addr %s1006, 4
        %s1008 = scalar_lea.vmem %s1, %s1007
        %p1009 = scmp.lt.s32.totalorder %s55, 1
        %s1010 = scalar_select %p1009, %s55, 1
        %s1011 = scalar_lea.vmem %s2, %s1010
        %p1012 = scmp.lt.s32.totalorder %s55, 1
        %s1013 = scalar_select %p1012, %s55, 1
        %s1014 = smul.addr %s1013, 4
        %s1015 = smul.addr %s1014, 4
        %s1016 = scalar_lea.vmem %s3, %s1015
        %p1017 = scmp.lt.s32.totalorder %s55, 1
        %s1018 = scalar_select %p1017, %s55, 1
        %s1019 = scalar_lea.vmem %s4, %s1018
        %p1020 = scmp.lt.s32.totalorder %s55, 1
        %s1021 = scalar_select %p1020, %s55, 1
        %s1022 = scalar_lea.vmem %s5, %s1021
        %p1023 = scmp.lt.s32.totalorder %s55, 1
        %s1024 = scalar_select %p1023, %s55, 1
        %s1025 = scalar_lea.vmem %s6, %s1024
        %p1026 = scmp.lt.s32.totalorder %s55, 1
        %s1027 = scalar_select %p1026, %s55, 1
        %s1028 = smul.addr %s1027, 4
        %s1029 = smul.addr %s1028, 4
        %s1030 = scalar_lea.vmem %s7, %s1029
        %p1031 = scmp.lt.s32.totalorder %s55, 1
        %s1032 = scalar_select %p1031, %s55, 1
        %s1033 = scalar_lea.vmem %s8, %s1032
        %p1034 = scmp.lt.s32.totalorder %s55, 1
        %s1035 = scalar_select %p1034, %s55, 1
        %s1036 = smul.addr %s1035, 8
        %s1037 = smul.addr %s1036, 4
        %s1038 = scalar_lea.vmem %s9, %s1037
        %p1039 = scmp.lt.s32.totalorder %s55, 1
        %s1040 = scalar_select %p1039, %s55, 1
        %s1041 = scalar_lea.vmem %s10, %s1040
        %p1043 = scmp.eq.s32.totalorder %s55, 0
        // Predicated region
        $region145: #{kozmo_decoder_forward.1} parent=103 // pred_check
          %p1044 = pneg %p1043
        $region146: #{kozmo_decoder_forward.1} parent=103 // pred_check_branch
          %1046 = sbr.rel (%p1044) target = $region148
        $region147: #{kozmo_decoder_forward.1} parent=103 // pred_region
          %v1047 = vld [vmem:[%s1003] sm:$0xff]
          %vm1048 = vcmask 261120
          %1049 = vst.msk [vmem:[#allocation2] sm:$0xff] %vm1048, %v1047
        $region148: #{kozmo_decoder_forward.1} parent=103 // pred_fallthru
          _
        %v1050 = vld [vmem:[#allocation2] sm:$0xff]
        %v1051 = vld [vmem:[%s1008] sm:$0xf]
        %v1052 = vld [vmem:[%s1008 + $0x4] sm:$0xf]
        %v1053 = vld [vmem:[%s1008 + $0x8] sm:$0xf]
        %v1054 = vld [vmem:[%s1008 + $0xc] sm:$0xf]
        %v1055 = vpack.c.bf16 %v1050, %v1050
        %v1056 = vld [vmem:[%s1011] sm:$0x1]
        %v1058 = vlaneseq
        %v1059 = vshrl.u32 %v1058, 7
        %v1060 = vsub.s32 0, %v1059
        %v1061 = vrot.slane %v1056, %v1060
        %v1067 = vunpack.c.l.b16 %v1051
        %v1068 = vunpack.c.l.b16 %v1052
        %v1069 = vunpack.c.l.b16 %v1053
        %v1070 = vunpack.c.l.b16 %v1054
        %v1071 = vpack.c.b16 %v1068, %v1067
        %v1072 = vpack.c.b16 %v1070, %v1069
        %vm1075 = vcmask 261120
        %v1077 = vsel %vm1075, %v1055, 0
        %1079 = vmatprep.subr.bf16.mxu0 0
        %1080 = vmatpush1.bf16.msra.mxu0 %v1071
        %1081 = vmatprep.subr.bf16.mxu0 0
        %1082 = vmatpush1.bf16.msra.mxu0 %v1072
        %1083 = vmatprep.subr.bf16.mxu0 0
        %1084 = vmatpush1.bf16.msra.mxu0 0
        %1085 = vmatprep.subr.bf16.mxu0 0
        %1086 = vmatpush1.bf16.msra.mxu0 0
        %1087 = vmatprep.subr.bf16.mxu0 0
        %1088 = vmatpush1.bf16.msra.mxu0 0
        %1089 = vmatprep.subr.bf16.mxu0 0
        %1090 = vmatpush1.bf16.msra.mxu0 0
        %1091 = vmatprep.subr.bf16.mxu0 0
        %1092 = vmatpush1.bf16.msra.mxu0 0
        %1093 = vmatprep.subr.bf16.mxu0 0
        %1094 = vmatpush1.bf16.msra.mxu0 0
        %1095 = vmatprep.subr.bf16.mxu0 0
        %1096 = vmatpush1.bf16.msra.mxu0 0
        %1097 = vmatprep.subr.bf16.mxu0 0
        %1098 = vmatpush1.bf16.msra.mxu0 0
        %1099 = vmatprep.subr.bf16.mxu0 0
        %1100 = vmatpush1.bf16.msra.mxu0 0
        %1101 = vmatprep.subr.bf16.mxu0 0
        %1102 = vmatpush1.bf16.msra.mxu0 0
        %1103 = vmatprep.subr.bf16.mxu0 0
        %1104 = vmatpush1.bf16.msra.mxu0 0
        %1105 = vmatprep.subr.bf16.mxu0 0
        %1106 = vmatpush1.bf16.msra.mxu0 0
        %1107 = vmatprep.subr.bf16.mxu0 0
        %1108 = vmatpush1.bf16.msra.mxu0 0
        %1109 = vmatprep.subr.bf16.mxu0 0
        %1110 = vmatpush1.bf16.msra.mxu0 0
        %1111 = vmatprep.mubr.bf16.mxu0 0
        %1112 = vmatmul.mubr.bf16.gmra.mrb[0].mxu0 %v1077
        %v1113 = vpop.f32.mrb[0].mxu0
        %v1114 = vadd.f32 %v1061, %v1113
        %v1115 = vpop.f32.mrb[0].mxu0
        %v1116 = vpop.f32.mrb[0].mxu0
        %v1117 = vpop.f32.mrb[0].mxu0
        %1118 = vdwg.mxu0
        %v1119 = vld [vmem:[%s1016] sm:$0xf]
        %v1120 = vld [vmem:[%s1016 + $0x4] sm:$0xf]
        %v1121 = vld [vmem:[%s1016 + $0x8] sm:$0xf]
        %v1122 = vld [vmem:[%s1016 + $0xc] sm:$0xf]
        %v1123 = vpack.c.bf16 %v1114, %v1114
        %1125 = vrot.lane.b32.xlu0 %v1123, 96
        %v1126 = vpop.permute.xlu0 %1125
        %vm1127 = vcmask 130048
        %v1129 = vsel %vm1127, %v1123, 0
        %v1132 = vsel %vm1127, %v1126, 0
        %1134 = vmatprep.subr.bf16.mxu0 0
        %1135 = vmatpush1.bf16.xpose.msra.mxu0 %v1132
        %1136 = vmatprep.subr.bf16.mxu0 0
        %1137 = vmatpush1.bf16.xpose.msra.mxu0 0
        %1138 = vmatprep.subr.bf16.mxu0 0
        %1139 = vmatpush1.bf16.xpose.msra.mxu0 0
        %1140 = vmatprep.subr.bf16.mxu0 0
        %1141 = vmatpush1.bf16.xpose.msra.mxu0 0
        %1142 = vmatprep.subr.bf16.mxu0 0
        %1143 = vmatpush1.bf16.xpose.msra.mxu0 0
        %1144 = vmatprep.subr.bf16.mxu0 0
        %1145 = vmatpush1.bf16.xpose.msra.mxu0 0
        %1146 = vmatprep.subr.bf16.mxu0 0
        %1147 = vmatpush1.bf16.xpose.msra.mxu0 0
        %1148 = vmatprep.subr.bf16.mxu0 0
        %1149 = vmatpush1.bf16.xpose.msra.mxu0 0
        %1150 = vmatprep.subr.bf16.mxu0 0
        %1151 = vmatpush1.bf16.xpose.msra.mxu0 0
        %1152 = vmatprep.subr.bf16.mxu0 0
        %1153 = vmatpush1.bf16.xpose.msra.mxu0 0
        %1154 = vmatprep.subr.bf16.mxu0 0
        %1155 = vmatpush1.bf16.xpose.msra.mxu0 0
        %1156 = vmatprep.subr.bf16.mxu0 0
        %1157 = vmatpush1.bf16.xpose.msra.mxu0 0
        %1158 = vmatprep.subr.bf16.mxu0 0
        %1159 = vmatpush1.bf16.xpose.msra.mxu0 0
        %1160 = vmatprep.subr.bf16.mxu0 0
        %1161 = vmatpush1.bf16.xpose.msra.mxu0 0
        %1162 = vmatprep.subr.bf16.mxu0 0
        %1163 = vmatpush1.bf16.xpose.msra.mxu0 0
        %1164 = vmatprep.subr.bf16.mxu0 0
        %1165 = vmatpush1.bf16.xpose.msra.mxu0 0
        %1166 = vmatprep.mubr.bf16.mxu0 0
        %1167 = vmatmul.mubr.bf16.gmra.mrb[0].mxu0 %v1129
        %v1168 = vpop.f32.mrb[0].mxu0
        %v1169 = vadd.f32 0.0, %v1168
        %v1170 = vpop.f32.mrb[0].mxu0
        %v1171 = vpop.f32.mrb[0].mxu0
        %v1172 = vpop.f32.mrb[0].mxu0
        %1173 = vdwg.mxu0
        %v1174 = vmul.f32 %v1169, 0.25
        %vm1175 = vcmask 64512
        %v1176 = vsel %vm1175, %v1174, -inf
        %1177 = vmax.xlane.f32.xlu0 %v1176
        %v1178 = vpop.xlane.xlu0 %1177
        %v1179 = vsub.f32 %v1174, %v1178
        %v1180 = vmul.f32 %v1179, 1.442695
        %v1181 = vpow.pop %v1180
        %v1182 = vsel %vm1175, %v1181, 0.0
        %1183 = vadd.xlane.f32.xlu0 %v1182
        %v1184 = vpop.xlane.xlu0 %1183
        %v1185 = vrcp.pop %v1184
        %v1186 = vmul.f32 %v1181, %v1185
        %v1187 = vpack.c.bf16 %v1186, %v1186
        %1188 = vrot.lane.b32.xlu0 %v1123, 64
        %v1189 = vpop.permute.xlu0 %1188
        %v1191 = vsel %vm1175, %v1187, 0
        %vm1193 = vcmask 1043456
        %v1195 = vsel %vm1193, %v1189, 0
        %1197 = vmatprep.subr.bf16.mxu0 0
        %1198 = vmatpush1.bf16.msra.mxu0 %v1195
        %1199 = vmatprep.subr.bf16.mxu0 0
        %1200 = vmatpush1.bf16.msra.mxu0 0
        %1201 = vmatprep.subr.bf16.mxu0 0
        %1202 = vmatpush1.bf16.msra.mxu0 0
        %1203 = vmatprep.subr.bf16.mxu0 0
        %1204 = vmatpush1.bf16.msra.mxu0 0
        %1205 = vmatprep.subr.bf16.mxu0 0
        %1206 = vmatpush1.bf16.msra.mxu0 0
        %1207 = vmatprep.subr.bf16.mxu0 0
        %1208 = vmatpush1.bf16.msra.mxu0 0
        %1209 = vmatprep.subr.bf16.mxu0 0
        %1210 = vmatpush1.bf16.msra.mxu0 0
        %1211 = vmatprep.subr.bf16.mxu0 0
        %1212 = vmatpush1.bf16.msra.mxu0 0
        %1213 = vmatprep.subr.bf16.mxu0 0
        %1214 = vmatpush1.bf16.msra.mxu0 0
        %1215 = vmatprep.subr.bf16.mxu0 0
        %1216 = vmatpush1.bf16.msra.mxu0 0
        %1217 = vmatprep.subr.bf16.mxu0 0
        %1218 = vmatpush1.bf16.msra.mxu0 0
        %1219 = vmatprep.subr.bf16.mxu0 0
        %1220 = vmatpush1.bf16.msra.mxu0 0
        %1221 = vmatprep.subr.bf16.mxu0 0
        %1222 = vmatpush1.bf16.msra.mxu0 0
        %1223 = vmatprep.subr.bf16.mxu0 0
        %1224 = vmatpush1.bf16.msra.mxu0 0
        %1225 = vmatprep.subr.bf16.mxu0 0
        %1226 = vmatpush1.bf16.msra.mxu0 0
        %1227 = vmatprep.subr.bf16.mxu0 0
        %1228 = vmatpush1.bf16.msra.mxu0 0
        %1229 = vmatprep.mubr.bf16.mxu0 0
        %1230 = vmatmul.mubr.bf16.gmra.mrb[0].mxu0 %v1191
        %v1231 = vpop.f32.mrb[0].mxu0
        %v1232 = vadd.f32 0.0, %v1231
        %v1233 = vpop.f32.mrb[0].mxu0
        %v1234 = vpop.f32.mrb[0].mxu0
        %v1235 = vpop.f32.mrb[0].mxu0
        %1236 = vdwg.mxu0
        %v1237 = vpack.c.bf16 %v1232, %v1232
        %1238 = vrot.lane.b32.xlu0 %v1123, 112
        %v1239 = vpop.permute.xlu0 %1238
        %1240 = vrot.lane.b32.xlu0 %v1123, 80
        %v1241 = vpop.permute.xlu0 %1240
        %v1243 = vsel %vm1127, %v1239, 0
        %v1246 = vsel %vm1127, %v1241, 0
        %1248 = vmatprep.subr.bf16.mxu0 0
        %1249 = vmatpush1.bf16.xpose.msra.mxu0 %v1246
        %1250 = vmatprep.subr.bf16.mxu0 0
        %1251 = vmatpush1.bf16.xpose.msra.mxu0 0
        %1252 = vmatprep.subr.bf16.mxu0 0
        %1253 = vmatpush1.bf16.xpose.msra.mxu0 0
        %1254 = vmatprep.subr.bf16.mxu0 0
        %1255 = vmatpush1.bf16.xpose.msra.mxu0 0
        %1256 = vmatprep.subr.bf16.mxu0 0
        %1257 = vmatpush1.bf16.xpose.msra.mxu0 0
        %1258 = vmatprep.subr.bf16.mxu0 0
        %1259 = vmatpush1.bf16.xpose.msra.mxu0 0
        %1260 = vmatprep.subr.bf16.mxu0 0
        %1261 = vmatpush1.bf16.xpose.msra.mxu0 0
        %1262 = vmatprep.subr.bf16.mxu0 0
        %1263 = vmatpush1.bf16.xpose.msra.mxu0 0
        %1264 = vmatprep.subr.bf16.mxu0 0
        %1265 = vmatpush1.bf16.xpose.msra.mxu0 0
        %1266 = vmatprep.subr.bf16.mxu0 0
        %1267 = vmatpush1.bf16.xpose.msra.mxu0 0
        %1268 = vmatprep.subr.bf16.mxu0 0
        %1269 = vmatpush1.bf16.xpose.msra.mxu0 0
        %1270 = vmatprep.subr.bf16.mxu0 0
        %1271 = vmatpush1.bf16.xpose.msra.mxu0 0
        %1272 = vmatprep.subr.bf16.mxu0 0
        %1273 = vmatpush1.bf16.xpose.msra.mxu0 0
        %1274 = vmatprep.subr.bf16.mxu0 0
        %1275 = vmatpush1.bf16.xpose.msra.mxu0 0
        %1276 = vmatprep.subr.bf16.mxu0 0
        %1277 = vmatpush1.bf16.xpose.msra.mxu0 0
        %1278 = vmatprep.subr.bf16.mxu0 0
        %1279 = vmatpush1.bf16.xpose.msra.mxu0 0
        %1280 = vmatprep.mubr.bf16.mxu0 0
        %1281 = vmatmul.mubr.bf16.gmra.mrb[0].mxu0 %v1243
        %v1282 = vpop.f32.mrb[0].mxu0
        %v1283 = vadd.f32 0.0, %v1282
        %v1284 = vpop.f32.mrb[0].mxu0
        %v1285 = vpop.f32.mrb[0].mxu0
        %v1286 = vpop.f32.mrb[0].mxu0
        %1287 = vdwg.mxu0
        %v1288 = vmul.f32 %v1283, 0.25
        %v1289 = vsel %vm1175, %v1288, -inf
        %1290 = vmax.xlane.f32.xlu0 %v1289
        %v1291 = vpop.xlane.xlu0 %1290
        %v1292 = vsub.f32 %v1288, %v1291
        %v1293 = vmul.f32 %v1292, 1.442695
        %v1294 = vpow.pop %v1293
        %v1295 = vsel %vm1175, %v1294, 0.0
        %1296 = vadd.xlane.f32.xlu0 %v1295
        %v1297 = vpop.xlane.xlu0 %1296
        %v1298 = vrcp.pop %v1297
        %v1299 = vmul.f32 %v1294, %v1298
        %v1300 = vpack.c.bf16 %v1299, %v1299
        %1301 = vrot.lane.b32.xlu0 %v1123, 48
        %v1302 = vpop.permute.xlu0 %1301
        %v1304 = vsel %vm1175, %v1300, 0
        %v1307 = vsel %vm1193, %v1302, 0
        %1309 = vmatprep.subr.bf16.mxu0 0
        %1310 = vmatpush1.bf16.msra.mxu0 %v1307
        %1311 = vmatprep.subr.bf16.mxu0 0
        %1312 = vmatpush1.bf16.msra.mxu0 0
        %1313 = vmatprep.subr.bf16.mxu0 0
        %1314 = vmatpush1.bf16.msra.mxu0 0
        %1315 = vmatprep.subr.bf16.mxu0 0
        %1316 = vmatpush1.bf16.msra.mxu0 0
        %1317 = vmatprep.subr.bf16.mxu0 0
        %1318 = vmatpush1.bf16.msra.mxu0 0
        %1319 = vmatprep.subr.bf16.mxu0 0
        %1320 = vmatpush1.bf16.msra.mxu0 0
        %1321 = vmatprep.subr.bf16.mxu0 0
        %1322 = vmatpush1.bf16.msra.mxu0 0
        %1323 = vmatprep.subr.bf16.mxu0 0
        %1324 = vmatpush1.bf16.msra.mxu0 0
        %1325 = vmatprep.subr.bf16.mxu0 0
        %1326 = vmatpush1.bf16.msra.mxu0 0
        %1327 = vmatprep.subr.bf16.mxu0 0
        %1328 = vmatpush1.bf16.msra.mxu0 0
        %1329 = vmatprep.subr.bf16.mxu0 0
        %1330 = vmatpush1.bf16.msra.mxu0 0
        %1331 = vmatprep.subr.bf16.mxu0 0
        %1332 = vmatpush1.bf16.msra.mxu0 0
        %1333 = vmatprep.subr.bf16.mxu0 0
        %1334 = vmatpush1.bf16.msra.mxu0 0
        %1335 = vmatprep.subr.bf16.mxu0 0
        %1336 = vmatpush1.bf16.msra.mxu0 0
        %1337 = vmatprep.subr.bf16.mxu0 0
        %1338 = vmatpush1.bf16.msra.mxu0 0
        %1339 = vmatprep.subr.bf16.mxu0 0
        %1340 = vmatpush1.bf16.msra.mxu0 0
        %1341 = vmatprep.mubr.bf16.mxu0 0
        %1342 = vmatmul.mubr.bf16.gmra.mrb[0].mxu0 %v1304
        %v1343 = vpop.f32.mrb[0].mxu0
        %v1344 = vadd.f32 0.0, %v1343
        %v1345 = vpop.f32.mrb[0].mxu0
        %v1346 = vpop.f32.mrb[0].mxu0
        %v1347 = vpop.f32.mrb[0].mxu0
        %1348 = vdwg.mxu0
        %v1349 = vpack.c.bf16 %v1344, %v1344
        %v1352 = vunpack.c.l.b16 %v1121
        %v1353 = vunpack.c.l.b16 %v1122
        %v1354 = vpack.c.b16 %v1353, %v1352
        %v1357 = vsel %vm1127, %v1349, 0
        %1359 = vmatprep.subr.bf16.mxu0 0
        %1360 = vmatpush1.bf16.msra.mxu0 %v1354
        %1361 = vmatprep.subr.bf16.mxu0 0
        %1362 = vmatpush1.bf16.msra.mxu0 0
        %1363 = vmatprep.subr.bf16.mxu0 0
        %1364 = vmatpush1.bf16.msra.mxu0 0
        %1365 = vmatprep.subr.bf16.mxu0 0
        %1366 = vmatpush1.bf16.msra.mxu0 0
        %1367 = vmatprep.subr.bf16.mxu0 0
        %1368 = vmatpush1.bf16.msra.mxu0 0
        %1369 = vmatprep.subr.bf16.mxu0 0
        %1370 = vmatpush1.bf16.msra.mxu0 0
        %1371 = vmatprep.subr.bf16.mxu0 0
        %1372 = vmatpush1.bf16.msra.mxu0 0
        %1373 = vmatprep.subr.bf16.mxu0 0
        %1374 = vmatpush1.bf16.msra.mxu0 0
        %1375 = vmatprep.subr.bf16.mxu0 0
        %1376 = vmatpush1.bf16.msra.mxu0 0
        %1377 = vmatprep.subr.bf16.mxu0 0
        %1378 = vmatpush1.bf16.msra.mxu0 0
        %1379 = vmatprep.subr.bf16.mxu0 0
        %1380 = vmatpush1.bf16.msra.mxu0 0
        %1381 = vmatprep.subr.bf16.mxu0 0
        %1382 = vmatpush1.bf16.msra.mxu0 0
        %1383 = vmatprep.subr.bf16.mxu0 0
        %1384 = vmatpush1.bf16.msra.mxu0 0
        %1385 = vmatprep.subr.bf16.mxu0 0
        %1386 = vmatpush1.bf16.msra.mxu0 0
        %1387 = vmatprep.subr.bf16.mxu0 0
        %1388 = vmatpush1.bf16.msra.mxu0 0
        %1389 = vmatprep.subr.bf16.mxu0 0
        %1390 = vmatpush1.bf16.msra.mxu0 0
        %1391 = vmatprep.mubr.bf16.mxu0 0
        %1392 = vmatmul.mubr.bf16.gmra.mrb[0].mxu0 %v1357
        %v1393 = vpop.f32.mrb[0].mxu0
        %v1394 = vadd.f32 0.0, %v1393
        %v1395 = vpop.f32.mrb[0].mxu0
        %v1396 = vpop.f32.mrb[0].mxu0
        %v1397 = vpop.f32.mrb[0].mxu0
        %1398 = vdwg.mxu0
        %v1401 = vunpack.c.l.b16 %v1119
        %v1402 = vunpack.c.l.b16 %v1120
        %v1403 = vpack.c.b16 %v1402, %v1401
        %v1406 = vsel %vm1127, %v1237, 0
        %1408 = vmatprep.subr.bf16.mxu0 0
        %1409 = vmatpush1.bf16.msra.mxu0 %v1403
        %1410 = vmatprep.subr.bf16.mxu0 0
        %1411 = vmatpush1.bf16.msra.mxu0 0
        %1412 = vmatprep.subr.bf16.mxu0 0
        %1413 = vmatpush1.bf16.msra.mxu0 0
        %1414 = vmatprep.subr.bf16.mxu0 0
        %1415 = vmatpush1.bf16.msra.mxu0 0
        %1416 = vmatprep.subr.bf16.mxu0 0
        %1417 = vmatpush1.bf16.msra.mxu0 0
        %1418 = vmatprep.subr.bf16.mxu0 0
        %1419 = vmatpush1.bf16.msra.mxu0 0
        %1420 = vmatprep.subr.bf16.mxu0 0
        %1421 = vmatpush1.bf16.msra.mxu0 0
        %1422 = vmatprep.subr.bf16.mxu0 0
        %1423 = vmatpush1.bf16.msra.mxu0 0
        %1424 = vmatprep.subr.bf16.mxu0 0
        %1425 = vmatpush1.bf16.msra.mxu0 0
        %1426 = vmatprep.subr.bf16.mxu0 0
        %1427 = vmatpush1.bf16.msra.mxu0 0
        %1428 = vmatprep.subr.bf16.mxu0 0
        %1429 = vmatpush1.bf16.msra.mxu0 0
        %1430 = vmatprep.subr.bf16.mxu0 0
        %1431 = vmatpush1.bf16.msra.mxu0 0
        %1432 = vmatprep.subr.bf16.mxu0 0
        %1433 = vmatpush1.bf16.msra.mxu0 0
        %1434 = vmatprep.subr.bf16.mxu0 0
        %1435 = vmatpush1.bf16.msra.mxu0 0
        %1436 = vmatprep.subr.bf16.mxu0 0
        %1437 = vmatpush1.bf16.msra.mxu0 0
        %1438 = vmatprep.subr.bf16.mxu0 0
        %1439 = vmatpush1.bf16.msra.mxu0 0
        %1440 = vmatprep.mubr.bf16.mxu0 0
        %1441 = vmatmul.mubr.bf16.gmra.mrb[0].mxu0 %v1406
        %v1442 = vpop.f32.mrb[0].mxu0
        %v1443 = vadd.f32 %v1394, %v1442
        %v1444 = vpop.f32.mrb[0].mxu0
        %v1445 = vpop.f32.mrb[0].mxu0
        %v1446 = vpop.f32.mrb[0].mxu0
        %1447 = vdwg.mxu0
        %v1448 = vld [vmem:[%s1019] sm:$0x1]
        %v1450 = vlaneseq
        %v1451 = vshrl.u32 %v1450, 7
        %v1452 = vsub.s32 0, %v1451
        %v1453 = vrot.slane %v1448, %v1452
        %v1455 = vadd.f32 %v1443, %v1453
        %v1456 = vadd.f32 %v1455, %v1050
        %v1457 = vld [vmem:[%s1022] sm:$0x1]
        %v1458 = vld [vmem:[%s1025] sm:$0x1]
        %v1459 = vsel %vm1075, %v1456, 0.0
        %1460 = vadd.xlane.f32.xlu0 %v1459
        %v1461 = vpop.xlane.xlu0 %1460
        %v1462 = vrcp.pop 32.0
        %v1463 = vmul.f32 %v1461, %v1462
        %v1464 = vsub.f32 %v1456, %v1463
        %v1465 = vmul.f32 %v1464, %v1464
        %v1466 = vsel %vm1075, %v1465, 0.0
        %1467 = vadd.xlane.f32.xlu0 %v1466
        %v1468 = vpop.xlane.xlu0 %1467
        %v1469 = vmul.f32 %v1468, %v1462
        %v1470 = vadd.f32 %v1469, 1e-12
        %v1471 = vrsqrt.pop %v1470
        %v1472 = vmul.f32 %v1464, %v1471
        %v1474 = vlaneseq
        %v1475 = vshrl.u32 %v1474, 7
        %v1476 = vsub.s32 0, %v1475
        %v1477 = vrot.slane %v1457, %v1476
        %v1479 = vmul.f32 %v1472, %v1477
        %v1481 = vlaneseq
        %v1482 = vshrl.u32 %v1481, 7
        %v1483 = vsub.s32 0, %v1482
        %v1484 = vrot.slane %v1458, %v1483
        %v1486 = vadd.f32 %v1479, %v1484
        %v1487 = vld [vmem:[%s1030] sm:$0xf]
        %v1488 = vld [vmem:[%s1030 + $0x4] sm:$0xf]
        %v1489 = vld [vmem:[%s1030 + $0x8] sm:$0xf]
        %v1490 = vld [vmem:[%s1030 + $0xc] sm:$0xf]
        %v1491 = vpack.c.bf16 %v1486, %v1486
        %v1492 = vld [vmem:[%s1033] sm:$0x1]
        %v1494 = vlaneseq
        %v1495 = vshrl.u32 %v1494, 7
        %v1496 = vsub.s32 0, %v1495
        %v1497 = vrot.slane %v1492, %v1496
        %v1503 = vunpack.c.l.b16 %v1487
        %v1504 = vunpack.c.l.b16 %v1488
        %v1505 = vunpack.c.l.b16 %v1489
        %v1506 = vunpack.c.l.b16 %v1490
        %v1507 = vpack.c.b16 %v1504, %v1503
        %v1508 = vpack.c.b16 %v1506, %v1505
        %v1512 = vsel %vm1075, %v1491, 0
        %1514 = vmatprep.subr.bf16.mxu0 0
        %1515 = vmatpush1.bf16.msra.mxu0 %v1507
        %1516 = vmatprep.subr.bf16.mxu0 0
        %1517 = vmatpush1.bf16.msra.mxu0 %v1508
        %1518 = vmatprep.subr.bf16.mxu0 0
        %1519 = vmatpush1.bf16.msra.mxu0 0
        %1520 = vmatprep.subr.bf16.mxu0 0
        %1521 = vmatpush1.bf16.msra.mxu0 0
        %1522 = vmatprep.subr.bf16.mxu0 0
        %1523 = vmatpush1.bf16.msra.mxu0 0
        %1524 = vmatprep.subr.bf16.mxu0 0
        %1525 = vmatpush1.bf16.msra.mxu0 0
        %1526 = vmatprep.subr.bf16.mxu0 0
        %1527 = vmatpush1.bf16.msra.mxu0 0
        %1528 = vmatprep.subr.bf16.mxu0 0
        %1529 = vmatpush1.bf16.msra.mxu0 0
        %1530 = vmatprep.subr.bf16.mxu0 0
        %1531 = vmatpush1.bf16.msra.mxu0 0
        %1532 = vmatprep.subr.bf16.mxu0 0
        %1533 = vmatpush1.bf16.msra.mxu0 0
        %1534 = vmatprep.subr.bf16.mxu0 0
        %1535 = vmatpush1.bf16.msra.mxu0 0
        %1536 = vmatprep.subr.bf16.mxu0 0
        %1537 = vmatpush1.bf16.msra.mxu0 0
        %1538 = vmatprep.subr.bf16.mxu0 0
        %1539 = vmatpush1.bf16.msra.mxu0 0
        %1540 = vmatprep.subr.bf16.mxu0 0
        %1541 = vmatpush1.bf16.msra.mxu0 0
        %1542 = vmatprep.subr.bf16.mxu0 0
        %1543 = vmatpush1.bf16.msra.mxu0 0
        %1544 = vmatprep.subr.bf16.mxu0 0
        %1545 = vmatpush1.bf16.msra.mxu0 0
        %1546 = vmatprep.mubr.bf16.mxu0 0
        %1547 = vmatmul.mubr.bf16.gmra.mrb[0].mxu0 %v1512
        %v1548 = vpop.f32.mrb[0].mxu0
        %v1549 = vadd.f32 %v1497, %v1548
        %v1550 = vpop.f32.mrb[0].mxu0
        %v1551 = vpop.f32.mrb[0].mxu0
        %v1552 = vpop.f32.mrb[0].mxu0
        %1553 = vdwg.mxu0
        %v1554 = vmul.f32 %v1549, 0.5
        %v1555 = vmul.f32 %v1549, 0.70710677
        %v1556 = verf.f32.pop %v1555
        %v1557 = vadd.f32 %v1556, 1.0
        %v1558 = vmul.f32 %v1554, %v1557
        %v1559 = vld [vmem:[%s1038] sm:$0xf]
        %v1560 = vld [vmem:[%s1038 + $0x4] sm:$0xf]
        %v1561 = vld [vmem:[%s1038 + $0x8] sm:$0xf]
        %v1562 = vld [vmem:[%s1038 + $0xc] sm:$0xf]
        %v1563 = vld [vmem:[%s1038 + $0x10] sm:$0xf]
        %v1564 = vld [vmem:[%s1038 + $0x14] sm:$0xf]
        %v1565 = vld [vmem:[%s1038 + $0x18] sm:$0xf]
        %v1566 = vld [vmem:[%s1038 + $0x1c] sm:$0xf]
        %v1567 = vpack.c.bf16 %v1558, %v1558
        %v1568 = vld [vmem:[%s1041] sm:$0x1]
        %v1570 = vlaneseq
        %v1571 = vshrl.u32 %v1570, 7
        %v1572 = vsub.s32 0, %v1571
        %v1573 = vrot.slane %v1568, %v1572
        %v1583 = vunpack.c.l.b16 %v1559
        %v1584 = vunpack.c.l.b16 %v1560
        %v1585 = vunpack.c.l.b16 %v1561
        %v1586 = vunpack.c.l.b16 %v1562
        %v1587 = vunpack.c.l.b16 %v1563
        %v1588 = vunpack.c.l.b16 %v1564
        %v1589 = vunpack.c.l.b16 %v1565
        %v1590 = vunpack.c.l.b16 %v1566
        %v1591 = vpack.c.b16 %v1584, %v1583
        %v1592 = vpack.c.b16 %v1586, %v1585
        %v1593 = vpack.c.b16 %v1588, %v1587
        %v1594 = vpack.c.b16 %v1590, %v1589
        %vm1599 = vcmask 523264
        %v1601 = vsel %vm1599, %v1567, 0
        %1603 = vmatprep.subr.bf16.mxu0 0
        %1604 = vmatpush1.bf16.msra.mxu0 %v1591
        %1605 = vmatprep.subr.bf16.mxu0 0
        %1606 = vmatpush1.bf16.msra.mxu0 %v1592
        %1607 = vmatprep.subr.bf16.mxu0 0
        %1608 = vmatpush1.bf16.msra.mxu0 %v1593
        %1609 = vmatprep.subr.bf16.mxu0 0
        %1610 = vmatpush1.bf16.msra.mxu0 %v1594
        %1611 = vmatprep.subr.bf16.mxu0 0
        %1612 = vmatpush1.bf16.msra.mxu0 0
        %1613 = vmatprep.subr.bf16.mxu0 0
        %1614 = vmatpush1.bf16.msra.mxu0 0
        %1615 = vmatprep.subr.bf16.mxu0 0
        %1616 = vmatpush1.bf16.msra.mxu0 0
        %1617 = vmatprep.subr.bf16.mxu0 0
        %1618 = vmatpush1.bf16.msra.mxu0 0
        %1619 = vmatprep.subr.bf16.mxu0 0
        %1620 = vmatpush1.bf16.msra.mxu0 0
        %1621 = vmatprep.subr.bf16.mxu0 0
        %1622 = vmatpush1.bf16.msra.mxu0 0
        %1623 = vmatprep.subr.bf16.mxu0 0
        %1624 = vmatpush1.bf16.msra.mxu0 0
        %1625 = vmatprep.subr.bf16.mxu0 0
        %1626 = vmatpush1.bf16.msra.mxu0 0
        %1627 = vmatprep.subr.bf16.mxu0 0
        %1628 = vmatpush1.bf16.msra.mxu0 0
        %1629 = vmatprep.subr.bf16.mxu0 0
        %1630 = vmatpush1.bf16.msra.mxu0 0
        %1631 = vmatprep.subr.bf16.mxu0 0
        %1632 = vmatpush1.bf16.msra.mxu0 0
        %1633 = vmatprep.subr.bf16.mxu0 0
        %1634 = vmatpush1.bf16.msra.mxu0 0
        %1635 = vmatprep.mubr.bf16.mxu0 0
        %1636 = vmatmul.mubr.bf16.gmra.mrb[0].mxu0 %v1601
        %v1637 = vpop.f32.mrb[0].mxu0
        %v1638 = vadd.f32 %v1573, %v1637
        %v1639 = vpop.f32.mrb[0].mxu0
        %v1640 = vpop.f32.mrb[0].mxu0
        %v1641 = vpop.f32.mrb[0].mxu0
        %1642 = vdwg.mxu0
        %v1643 = vadd.f32 %v1638, %v1486
        %v1644 = vld [vmem:[%s849] sm:$0x1]
        %v1645 = vld [vmem:[%s857] sm:$0x1]
        %v1646 = vsel %vm1075, %v1643, 0.0
        %1647 = vadd.xlane.f32.xlu0 %v1646
        %v1648 = vpop.xlane.xlu0 %1647
        %v1649 = vmul.f32 %v1648, %v1462
        %v1650 = vsub.f32 %v1643, %v1649
        %v1651 = vmul.f32 %v1650, %v1650
        %v1652 = vsel %vm1075, %v1651, 0.0
        %1653 = vadd.xlane.f32.xlu0 %v1652
        %v1654 = vpop.xlane.xlu0 %1653
        %v1655 = vmul.f32 %v1654, %v1462
        %v1656 = vadd.f32 %v1655, 1e-12
        %v1657 = vrsqrt.pop %v1656
        %v1658 = vmul.f32 %v1650, %v1657
        %v1660 = vlaneseq
        %v1661 = vshrl.u32 %v1660, 7
        %v1662 = vsub.s32 0, %v1661
        %v1663 = vrot.slane %v1644, %v1662
        %v1665 = vmul.f32 %v1658, %v1663
        %v1667 = vlaneseq
        %v1668 = vshrl.u32 %v1667, 7
        %v1669 = vsub.s32 0, %v1668
        %v1670 = vrot.slane %v1645, %v1669
        %v1672 = vadd.f32 %v1665, %v1670
        %1673 = vst.msk [vmem:[#allocation2] sm:$0xff] %vm1075, %v1672
        %p1674 = scmp.eq.s32.totalorder %s55, 1
        // Predicated region
        $region149: #{kozmo_decoder_forward.1} parent=103 // pred_check
          %p1675 = pneg %p1674
        $region150: #{kozmo_decoder_forward.1} parent=103 // pred_check_branch
          %1677 = sbr.rel (%p1675) target = $region152
        $region151: #{kozmo_decoder_forward.1} parent=103 // pred_region
          %v1678 = vld [vmem:[#allocation8] sm:$0xf]
          %v1679 = vld [vmem:[#allocation8 + $0x4] sm:$0xf]
          %v1680 = vld [vmem:[#allocation8 + $0x8] sm:$0xf]
          %v1681 = vld [vmem:[#allocation8 + $0xc] sm:$0xf]
          %v1682 = vpack.c.bf16 %v1672, %v1672
          %v1687 = vunpack.c.l.b16 %v1678
          %v1688 = vunpack.c.l.b16 %v1679
          %v1689 = vunpack.c.l.b16 %v1680
          %v1690 = vunpack.c.l.b16 %v1681
          %v1691 = vpack.c.b16 %v1688, %v1687
          %v1692 = vpack.c.b16 %v1690, %v1689
          %v1696 = vsel %vm1075, %v1682, 0
          %1698 = vmatprep.subr.bf16.mxu0 0
          %1699 = vmatpush1.bf16.msra.mxu0 %v1691
          %1700 = vmatprep.subr.bf16.mxu0 0
          %1701 = vmatpush1.bf16.msra.mxu0 %v1692
          %1702 = vmatprep.subr.bf16.mxu0 0
          %1703 = vmatpush1.bf16.msra.mxu0 0
          %1704 = vmatprep.subr.bf16.mxu0 0
          %1705 = vmatpush1.bf16.msra.mxu0 0
          %1706 = vmatprep.subr.bf16.mxu0 0
          %1707 = vmatpush1.bf16.msra.mxu0 0
          %1708 = vmatprep.subr.bf16.mxu0 0
          %1709 = vmatpush1.bf16.msra.mxu0 0
          %1710 = vmatprep.subr.bf16.mxu0 0
          %1711 = vmatpush1.bf16.msra.mxu0 0
          %1712 = vmatprep.subr.bf16.mxu0 0
          %1713 = vmatpush1.bf16.msra.mxu0 0
          %1714 = vmatprep.subr.bf16.mxu0 0
          %1715 = vmatpush1.bf16.msra.mxu0 0
          %1716 = vmatprep.subr.bf16.mxu0 0
          %1717 = vmatpush1.bf16.msra.mxu0 0
          %1718 = vmatprep.subr.bf16.mxu0 0
          %1719 = vmatpush1.bf16.msra.mxu0 0
          %1720 = vmatprep.subr.bf16.mxu0 0
          %1721 = vmatpush1.bf16.msra.mxu0 0
          %1722 = vmatprep.subr.bf16.mxu0 0
          %1723 = vmatpush1.bf16.msra.mxu0 0
          %1724 = vmatprep.subr.bf16.mxu0 0
          %1725 = vmatpush1.bf16.msra.mxu0 0
          %1726 = vmatprep.subr.bf16.mxu0 0
          %1727 = vmatpush1.bf16.msra.mxu0 0
          %1728 = vmatprep.subr.bf16.mxu0 0
          %1729 = vmatpush1.bf16.msra.mxu0 0
          %1730 = vmatprep.mubr.bf16.mxu0 0
          %1731 = vmatmul.mubr.bf16.gmra.mrb[0].mxu0 %v1696
          %v1732 = vpop.f32.mrb[0].mxu0
          %v1733 = vadd.f32 0.0, %v1732
          %v1734 = vpop.f32.mrb[0].mxu0
          %v1735 = vpop.f32.mrb[0].mxu0
          %v1736 = vpop.f32.mrb[0].mxu0
          %1737 = vdwg.mxu0
          %v1738 = vsel %vm1075, %v1733, 0.0
          %1739 = vadd.xlane.f32.xlu0 %v1738
          %v1740 = vpop.xlane.xlu0 %1739
          %v1741 = vmul.f32 %v1740, %v1462
          %v1742 = vsub.f32 %v1733, %v1741
          %v1743 = vmul.f32 %v1742, %v1742
          %v1744 = vsel %vm1075, %v1743, 0.0
          %1745 = vadd.xlane.f32.xlu0 %v1744
          %v1746 = vpop.xlane.xlu0 %1745
          %v1747 = vmul.f32 %v1746, %v1462
          %v1748 = vadd.f32 %v1747, 1e-05
          %v1749 = vrsqrt.pop %v1748
          %v1750 = vmul.f32 %v1742, %v1749
          %v1751 = vld [vmem:[#allocation9] sm:$0xf]
          %v1752 = vld [vmem:[#allocation9 + $0x4] sm:$0xf]
          %v1753 = vld [vmem:[#allocation9 + $0x8] sm:$0xf]
          %v1754 = vld [vmem:[#allocation9 + $0xc] sm:$0xf]
          %v1755 = vpack.c.bf16 %v1750, %v1750
          %v1760 = vunpack.c.l.b16 %v1751
          %v1761 = vunpack.c.l.b16 %v1752
          %v1762 = vunpack.c.l.b16 %v1753
          %v1763 = vunpack.c.l.b16 %v1754
          %v1764 = vpack.c.b16 %v1761, %v1760
          %v1765 = vpack.c.b16 %v1763, %v1762
          %v1769 = vsel %vm1075, %v1755, 0
          %1771 = vmatprep.subr.bf16.mxu0 0
          %1772 = vmatpush1.bf16.msra.mxu0 %v1764
          %1773 = vmatprep.subr.bf16.mxu0 0
          %1774 = vmatpush1.bf16.msra.mxu0 %v1765
          %1775 = vmatprep.subr.bf16.mxu0 0
          %1776 = vmatpush1.bf16.msra.mxu0 0
          %1777 = vmatprep.subr.bf16.mxu0 0
          %1778 = vmatpush1.bf16.msra.mxu0 0
          %1779 = vmatprep.subr.bf16.mxu0 0
          %1780 = vmatpush1.bf16.msra.mxu0 0
          %1781 = vmatprep.subr.bf16.mxu0 0
          %1782 = vmatpush1.bf16.msra.mxu0 0
          %1783 = vmatprep.subr.bf16.mxu0 0
          %1784 = vmatpush1.bf16.msra.mxu0 0
          %1785 = vmatprep.subr.bf16.mxu0 0
          %1786 = vmatpush1.bf16.msra.mxu0 0
          %1787 = vmatprep.subr.bf16.mxu0 0
          %1788 = vmatpush1.bf16.msra.mxu0 0
          %1789 = vmatprep.subr.bf16.mxu0 0
          %1790 = vmatpush1.bf16.msra.mxu0 0
          %1791 = vmatprep.subr.bf16.mxu0 0
          %1792 = vmatpush1.bf16.msra.mxu0 0
          %1793 = vmatprep.subr.bf16.mxu0 0
          %1794 = vmatpush1.bf16.msra.mxu0 0
          %1795 = vmatprep.subr.bf16.mxu0 0
          %1796 = vmatpush1.bf16.msra.mxu0 0
          %1797 = vmatprep.subr.bf16.mxu0 0
          %1798 = vmatpush1.bf16.msra.mxu0 0
          %1799 = vmatprep.subr.bf16.mxu0 0
          %1800 = vmatpush1.bf16.msra.mxu0 0
          %1801 = vmatprep.subr.bf16.mxu0 0
          %1802 = vmatpush1.bf16.msra.mxu0 0
          %1803 = vmatprep.mubr.bf16.mxu0 0
          %1804 = vmatmul.mubr.bf16.gmra.mrb[0].mxu0 %v1769
          %v1805 = vpop.f32.mrb[0].mxu0
          %v1806 = vadd.f32 0.0, %v1805
          %v1807 = vpop.f32.mrb[0].mxu0
          %v1808 = vpop.f32.mrb[0].mxu0
          %v1809 = vpop.f32.mrb[0].mxu0
          %1810 = vdwg.mxu0
          %1811 = vst.msk [vmem:[%s999] sm:$0xff] %vm1075, %v1806
          %v1812 = vld [vmem:[#allocation11] sm:$0xf]
          %v1813 = vld [vmem:[#allocation11 + $0x4] sm:$0xf]
          %v1814 = vld [vmem:[#allocation11 + $0x8] sm:$0xf]
          %v1815 = vld [vmem:[#allocation11 + $0xc] sm:$0xf]
          %v1816 = vpack.c.bf16 %v1806, %v1806
          %v1817 = vld [vmem:[#allocation12] sm:$0x1]
          %v1819 = vlaneseq
          %v1820 = vshrl.u32 %v1819, 7
          %v1821 = vsub.s32 0, %v1820
          %v1822 = vrot.slane %v1817, %v1821
          %v1828 = vunpack.c.l.b16 %v1812
          %v1829 = vunpack.c.l.b16 %v1813
          %v1830 = vunpack.c.l.b16 %v1814
          %v1831 = vunpack.c.l.b16 %v1815
          %v1832 = vpack.c.b16 %v1829, %v1828
          %v1833 = vpack.c.b16 %v1831, %v1830
          %v1837 = vsel %vm1075, %v1816, 0
          %1839 = vmatprep.subr.bf16.mxu0 0
          %1840 = vmatpush1.bf16.msra.mxu0 %v1832
          %1841 = vmatprep.subr.bf16.mxu0 0
          %1842 = vmatpush1.bf16.msra.mxu0 %v1833
          %1843 = vmatprep.subr.bf16.mxu0 0
          %1844 = vmatpush1.bf16.msra.mxu0 0
          %1845 = vmatprep.subr.bf16.mxu0 0
          %1846 = vmatpush1.bf16.msra.mxu0 0
          %1847 = vmatprep.subr.bf16.mxu0 0
          %1848 = vmatpush1.bf16.msra.mxu0 0
          %1849 = vmatprep.subr.bf16.mxu0 0
          %1850 = vmatpush1.bf16.msra.mxu0 0
          %1851 = vmatprep.subr.bf16.mxu0 0
          %1852 = vmatpush1.bf16.msra.mxu0 0
          %1853 = vmatprep.subr.bf16.mxu0 0
          %1854 = vmatpush1.bf16.msra.mxu0 0
          %1855 = vmatprep.subr.bf16.mxu0 0
          %1856 = vmatpush1.bf16.msra.mxu0 0
          %1857 = vmatprep.subr.bf16.mxu0 0
          %1858 = vmatpush1.bf16.msra.mxu0 0
          %1859 = vmatprep.subr.bf16.mxu0 0
          %1860 = vmatpush1.bf16.msra.mxu0 0
          %1861 = vmatprep.subr.bf16.mxu0 0
          %1862 = vmatpush1.bf16.msra.mxu0 0
          %1863 = vmatprep.subr.bf16.mxu0 0
          %1864 = vmatpush1.bf16.msra.mxu0 0
          %1865 = vmatprep.subr.bf16.mxu0 0
          %1866 = vmatpush1.bf16.msra.mxu0 0
          %1867 = vmatprep.subr.bf16.mxu0 0
          %1868 = vmatpush1.bf16.msra.mxu0 0
          %1869 = vmatprep.subr.bf16.mxu0 0
          %1870 = vmatpush1.bf16.msra.mxu0 0
          %1871 = vmatprep.mubr.bf16.mxu0 0
          %1872 = vmatmul.mubr.bf16.gmra.mrb[0].mxu0 %v1837
          %v1873 = vpop.f32.mrb[0].mxu0
          %v1874 = vadd.f32 %v1822, %v1873
          %v1875 = vpop.f32.mrb[0].mxu0
          %v1876 = vpop.f32.mrb[0].mxu0
          %v1877 = vpop.f32.mrb[0].mxu0
          %1878 = vdwg.mxu0
          %v1879 = vmax.f32 %v1874, 0.0
          %v1880 = vld [vmem:[#allocation14] sm:$0x1]
          %v1881 = vld [vmem:[#allocation15] sm:$0x1]
          %v1882 = vsel %vm1075, %v1879, 0.0
          %1883 = vadd.xlane.f32.xlu0 %v1882
          %v1884 = vpop.xlane.xlu0 %1883
          %v1885 = vmul.f32 %v1884, %v1462
          %v1886 = vsub.f32 %v1879, %v1885
          %v1887 = vmul.f32 %v1886, %v1886
          %v1888 = vsel %vm1075, %v1887, 0.0
          %1889 = vadd.xlane.f32.xlu0 %v1888
          %v1890 = vpop.xlane.xlu0 %1889
          %v1891 = vmul.f32 %v1890, %v1462
          %v1892 = vadd.f32 %v1891, 1e-05
          %v1893 = vrsqrt.pop %v1892
          %v1894 = vmul.f32 %v1886, %v1893
          %v1896 = vlaneseq
          %v1897 = vshrl.u32 %v1896, 7
          %v1898 = vsub.s32 0, %v1897
          %v1899 = vrot.slane %v1880, %v1898
          %v1901 = vmul.f32 %v1894, %v1899
          %v1903 = vlaneseq
          %v1904 = vshrl.u32 %v1903, 7
          %v1905 = vsub.s32 0, %v1904
          %v1906 = vrot.slane %v1881, %v1905
          %v1908 = vadd.f32 %v1901, %v1906
          %v1909 = vld [vmem:[#allocation17] sm:$0xf]
          %v1910 = vld [vmem:[#allocation17 + $0x4] sm:$0xf]
          %v1911 = vld [vmem:[#allocation17 + $0x8] sm:$0xf]
          %v1912 = vld [vmem:[#allocation17 + $0xc] sm:$0xf]
          %v1913 = vpack.c.bf16 %v1908, %v1908
          %v1914 = vld [vmem:[#allocation18] sm:$0x1]
          %v1916 = vlaneseq
          %v1917 = vshrl.u32 %v1916, 7
          %v1918 = vsub.s32 0, %v1917
          %v1919 = vrot.slane %v1914, %v1918
          %v1925 = vunpack.c.l.b16 %v1909
          %v1926 = vunpack.c.l.b16 %v1910
          %v1927 = vunpack.c.l.b16 %v1911
          %v1928 = vunpack.c.l.b16 %v1912
          %v1929 = vpack.c.b16 %v1926, %v1925
          %v1930 = vpack.c.b16 %v1928, %v1927
          %v1934 = vsel %vm1075, %v1913, 0
          %1936 = vmatprep.subr.bf16.mxu0 0
          %1937 = vmatpush1.bf16.msra.mxu0 %v1929
          %1938 = vmatprep.subr.bf16.mxu0 0
          %1939 = vmatpush1.bf16.msra.mxu0 %v1930
          %1940 = vmatprep.subr.bf16.mxu0 0
          %1941 = vmatpush1.bf16.msra.mxu0 0
          %1942 = vmatprep.subr.bf16.mxu0 0
          %1943 = vmatpush1.bf16.msra.mxu0 0
          %1944 = vmatprep.subr.bf16.mxu0 0
          %1945 = vmatpush1.bf16.msra.mxu0 0
          %1946 = vmatprep.subr.bf16.mxu0 0
          %1947 = vmatpush1.bf16.msra.mxu0 0
          %1948 = vmatprep.subr.bf16.mxu0 0
          %1949 = vmatpush1.bf16.msra.mxu0 0
          %1950 = vmatprep.subr.bf16.mxu0 0
          %1951 = vmatpush1.bf16.msra.mxu0 0
          %1952 = vmatprep.subr.bf16.mxu0 0
          %1953 = vmatpush1.bf16.msra.mxu0 0
          %1954 = vmatprep.subr.bf16.mxu0 0
          %1955 = vmatpush1.bf16.msra.mxu0 0
          %1956 = vmatprep.subr.bf16.mxu0 0
          %1957 = vmatpush1.bf16.msra.mxu0 0
          %1958 = vmatprep.subr.bf16.mxu0 0
          %1959 = vmatpush1.bf16.msra.mxu0 0
          %1960 = vmatprep.subr.bf16.mxu0 0
          %1961 = vmatpush1.bf16.msra.mxu0 0
          %1962 = vmatprep.subr.bf16.mxu0 0
          %1963 = vmatpush1.bf16.msra.mxu0 0
          %1964 = vmatprep.subr.bf16.mxu0 0
          %1965 = vmatpush1.bf16.msra.mxu0 0
          %1966 = vmatprep.subr.bf16.mxu0 0
          %1967 = vmatpush1.bf16.msra.mxu0 0
          %1968 = vmatprep.mubr.bf16.mxu0 0
          %1969 = vmatmul.mubr.bf16.gmra.mrb[0].mxu0 %v1934
          %v1970 = vpop.f32.mrb[0].mxu0
          %v1971 = vadd.f32 %v1919, %v1970
          %v1972 = vpop.f32.mrb[0].mxu0
          %v1973 = vpop.f32.mrb[0].mxu0
          %v1974 = vpop.f32.mrb[0].mxu0
          %1975 = vdwg.mxu0
          %1976 = vst [vmem:[%s992] sm:$0xff] %v1971
        $region152: #{kozmo_decoder_forward.1} parent=103 // pred_fallthru
          _
        %s1977 = sand.u32 %s576, 1
        %s1978 = scalar_lea.sflag [#allocation5], %s1977
        %s1979 = sand.u32 %s576, 1
        %s1980 = smul.addr %s1979, 8
        %s1981 = scalar_lea.vmem [#allocation20], %s1980
        %s1982 = sand.u32 %s602, 1
        %s1983 = scalar_lea.sflag [#allocation22], %s1982
        %s1984 = sand.u32 %s602, 1
        %s1985 = smul.addr %s1984, 8
        %s1986 = scalar_lea.vmem [#allocation21], %s1985
        // Predicated region
        $region153: #{kozmo_decoder_forward.1} parent=103 // pred_check
          %p1987 = pneg %p586
        $region154: #{kozmo_decoder_forward.1} parent=103 // pred_check_branch
          %1989 = sbr.rel (%p1987) target = $region156
        $region155: #{kozmo_decoder_forward.1} parent=103 // pred_region
          %s1991 = ssub.s32 128, 128
          %1992 = vsyncadd %s1978, %s1991
          %s1993 = smul.addr %s54, 128
          %s1994 = scalar_lea.hbm %s21, %s1993
          %s1996 = sshll.u32 %s1981, 4
          %s1997 = int_to_ptr.vmem [resolvable:$true] %s1996
          %1999 = dma.vmem_to_hbm [thread:$0]  %s1997, 128, %s1994, %s1978
        $region156: #{kozmo_decoder_forward.1} parent=103 // pred_fallthru
          _
        // Predicated region
        $region157: #{kozmo_decoder_forward.1} parent=103 // pred_check
          %p2000 = pneg %p612
        $region158: #{kozmo_decoder_forward.1} parent=103 // pred_check_branch
          %2002 = sbr.rel (%p2000) target = $region160
        $region159: #{kozmo_decoder_forward.1} parent=103 // pred_region
          %s2004 = ssub.s32 128, 128
          %2005 = vsyncadd %s1983, %s2004
          %s2006 = smul.addr %s54, 128
          %s2007 = scalar_lea.hbm %s22, %s2006
          %s2009 = sshll.u32 %s1986, 4
          %s2010 = int_to_ptr.vmem [resolvable:$true] %s2009
          %2012 = dma.vmem_to_hbm [thread:$0]  %s2010, 128, %s2007, %s1983
        $region160: #{kozmo_decoder_forward.1} parent=103 // pred_fallthru
          _
      $region104: #{kozmo_decoder_forward.1} parent=5 // pred_fallthru
        _
      %p2013 = scmp.le.s32.totalorder 2, %s45
      // Predicated region
      $region161: #{kozmo_decoder_forward.1} parent=5 // pred_check
        %p2014 = pneg %p2013
      $region162: #{kozmo_decoder_forward.1} parent=5 // pred_check_branch
        %2016 = sbr.rel (%p2014) target = $region164
      $region163: #{kozmo_decoder_forward.1} parent=5 // pred_region
        %s2017 = ssub.s32 %s45, 2
        // Predicated region
        $region165: #{kozmo_decoder_forward.1} parent=163 // pred_check
          %p2018 = pneg %p592
        $region166: #{kozmo_decoder_forward.1} parent=163 // pred_check_branch
          %2020 = sbr.rel (%p2018) target = $region168
        $region167: #{kozmo_decoder_forward.1} parent=163 // pred_region
          %s2021 = sand.u32 %s577, 1
          %s2022 = scalar_lea.sflag [#allocation5], %s2021
          %s2023 = sand.u32 %s577, 1
          %s2024 = smul.addr %s2023, 8
          %s2025 = scalar_lea.vmem [#allocation20], %s2024
          %2026 = dma.done %s2022, 128
        $region168: #{kozmo_decoder_forward.1} parent=163 // pred_fallthru
          _
        // Predicated region
        $region169: #{kozmo_decoder_forward.1} parent=163 // pred_check
          %p2027 = pneg %p618
        $region170: #{kozmo_decoder_forward.1} parent=163 // pred_check_branch
          %2029 = sbr.rel (%p2027) target = $region172
        $region171: #{kozmo_decoder_forward.1} parent=163 // pred_region
          %s2030 = sand.u32 %s603, 1
          %s2031 = scalar_lea.sflag [#allocation22], %s2030
          %s2032 = sand.u32 %s603, 1
          %s2033 = smul.addr %s2032, 8
          %s2034 = scalar_lea.vmem [#allocation21], %s2033
          %2035 = dma.done %s2031, 128
        $region172: #{kozmo_decoder_forward.1} parent=163 // pred_fallthru
          _
      $region164: #{kozmo_decoder_forward.1} parent=5 // pred_fallthru
        _
    $region6: #{kozmo_decoder_forward.1} parent=1 // loop_footer
      %s49 = sadd.s32 1, %s45
    $region7: #{kozmo_decoder_forward.1} parent=1 // loop_footer_branch
      %44 = sbr.rel target = $region3
    $region8: #{kozmo_decoder_forward.1} parent=1 // loop_exit
      _
    %2036 = vsyncpa [#allocation4], 1
    %s2037 = scalar_lea.sflag [#allocation4], 1
    %2038 = vsyncpa %s2037, 1
    %2039 = vsyncpa [#allocation7], 1
    %s2040 = scalar_lea.sflag [#allocation7], 1
    %2041 = vsyncpa %s2040, 1
    %2042 = vsyncpa [#allocation10], 1
    %2043 = vsyncpa [#allocation13], 1
    %2044 = vsyncpa [#allocation16], 1
    %2045 = vsyncpa [#allocation19], 1
    %2046 = vsyncpa [#allocation5], 1
    %s2047 = scalar_lea.sflag [#allocation5], 1
    %2048 = vsyncpa %s2047, 1
    %2049 = vsyncpa [#allocation22], 1
    %s2050 = scalar_lea.sflag [#allocation22], 1
    %2051 = vsyncpa %s2050, 1

</llo_original>
